<compile_context>
chip_gen: v6e
topology: v6e:2x2x1
jax: 0.10.0
libtpu: 0.0.40
codegen_flags: <defaults>
</compile_context>

<pallas_src>
import jax
import jax.numpy as jnp
import numpy as np
from jax import lax
from jax.experimental import pallas as pl
from jax.experimental.pallas import tpu as pltpu


def lstm_kernel(x_ref, wih1_ref, whh1_ref, b1_ref,
                w2_ref, b2_ref, wfc_ref, bfc_ref,
                out_ref, gx_ref):
    TB, _ = x_ref.shape
    H = whh1_ref.shape[0]
    B = out_ref.shape[0]
    T = TB // B

    # ---- prologue: hoisted layer-1 input projection for ALL timesteps ------
    # one well-shaped (T*B, E) @ (E, 4H) matmul instead of T tiny K=E matmuls,
    # bias b1 folded in here so it is off the serial path.
    gx_ref[...] = (jnp.dot(x_ref[...], wih1_ref[...],
                           preferred_element_type=jnp.float32)
                   + b1_ref[...])

    # hoist resident weights out of the recurrence (loaded once)
    whh1 = whh1_ref[...]          # (H, 4H)
    w2 = w2_ref[...]              # (2H, 4H) = [Wih2 ; Whh2]
    b2 = b2_ref[...]              # (1, 4H)

    def combine(gates, c):
        # full-width activations on the (B, 4H)=(8,128) vreg (2 EUP passes),
        # then static 32-lane slices.  PyTorch gate order: i, f, g, o.
        sig = jax.nn.sigmoid(gates)
        th = jnp.tanh(gates)
        i = sig[:, 0:H]
        f = sig[:, H:2 * H]
        o = sig[:, 3 * H:4 * H]
        g = th[:, 2 * H:3 * H]
        c_new = f * c + i * g
        h_new = o * jnp.tanh(c_new)
        return h_new, c_new

    def step(t, carry):
        h1, c1, h2, c2 = carry
        row = pl.multiple_of(t * B, B)
        gx_t = gx_ref[pl.ds(row, B), :]                    # (B, 4H)
        # layer 1: only the recurrent matmul sits on the serial chain
        g1 = gx_t + jnp.dot(h1, whh1, preferred_element_type=jnp.float32)
        h1, c1 = combine(g1, c1)
        # layer 2: fused [x_t, h] @ [Wih; Whh] -> a single MXU push per step
        xh = jnp.concatenate([h1, h2], axis=-1)            # (B, 2H)
        g2 = jnp.dot(xh, w2, preferred_element_type=jnp.float32) + b2
        h2, c2 = combine(g2, c2)
        return h1, c1, h2, c2

    zeros = jnp.zeros((B, H), jnp.float32)    # zero h0/c0, as in the module
    _, _, h2, _ = lax.fori_loop(0, T, step, (zeros, zeros, zeros, zeros),
                                unroll=True)

    # fc(out[:, -1, :]) -> lane-dense (B, 128-padded) store
    out_ref[...] = (jnp.dot(h2, wfc_ref[...], preferred_element_type=jnp.float32)
                    + bfc_ref[...]).astype(out_ref.dtype)


def simple_lstm_forward(x_ids, params):
    # glue: embedding gather + time-major flatten (done in the JAX wrapper)
    emb = params["embedding"][x_ids]                    # (B, T, E)
    B, T, E = emb.shape
    x_flat = jnp.transpose(emb, (1, 0, 2)).reshape(T * B, E)   # (T*B, E)

    H = params["whh1_t"].shape[0]
    C = params["wfc_t"].shape[1]
    C_pad = ((C + 127) // 128) * 128

    # one-time weight prep: fuse layer-2 weights, pad FC to lane-dense width
    w2_cat = jnp.concatenate([params["wih2_t"], params["whh2_t"]], axis=0)  # (2H,4H)
    wfc_pad = jnp.pad(params["wfc_t"], ((0, 0), (0, C_pad - C)))
    bfc_pad = jnp.pad(params["bfc"], ((0, 0), (0, C_pad - C)))

    def full(shape):
        return pl.BlockSpec(shape, lambda i, _n=len(shape): (0,) * _n)

    out = pl.pallas_call(
        lstm_kernel,
        out_shape=jax.ShapeDtypeStruct((B, C_pad), jnp.float32),
        grid=(1,),
        in_specs=[
            full((T * B, E)),                                 # x (all timesteps)
            full((E, 4 * H)), full((H, 4 * H)), full((1, 4 * H)),   # layer 1
            full((2 * H, 4 * H)), full((1, 4 * H)),                 # layer 2 (fused)
            full((H, C_pad)), full((1, C_pad)),                     # fc (padded)
        ],
        out_specs=pl.BlockSpec((B, C_pad), lambda i: (0, 0)),
        scratch_shapes=[pltpu.VMEM((T * B, 4 * H), jnp.float32)],   # hoisted gates
        compiler_params=pltpu.CompilerParams(
            dimension_semantics=("arbitrary",)),
    )(x_flat,
      params["wih1_t"], params["whh1_t"], params["b1"],
      w2_cat, params["b2"],
      wfc_pad, bfc_pad)
    return out[:, :C]


def reference_forward(x_ids, params):
    # pure-JAX reference of the same forward pass (for correctness check)
    emb = params["embedding"][x_ids]
    B, T, _ = emb.shape
    H = params["whh1_t"].shape[0]

    def cell(x, h, c, wih_t, whh_t, b):
        gates = x @ wih_t + h @ whh_t + b
        i, f, g, o = jnp.split(gates, 4, axis=-1)
        c_new = jax.nn.sigmoid(f) * c + jax.nn.sigmoid(i) * jnp.tanh(g)
        h_new = jax.nn.sigmoid(o) * jnp.tanh(c_new)
        return h_new, c_new

    h1 = jnp.zeros((B, H), jnp.float32)
    c1 = jnp.zeros((B, H), jnp.float32)
    h2 = jnp.zeros((B, H), jnp.float32)
    c2 = jnp.zeros((B, H), jnp.float32)
    for t in range(T):
        x_t = emb[:, t, :]
        h1, c1 = cell(x_t, h1, c1, params["wih1_t"], params["whh1_t"], params["b1"])
        h2, c2 = cell(h1, h2, c2, params["wih2_t"], params["whh2_t"], params["b2"])
    return h2 @ params["wfc_t"] + params["bfc"]


def init_params(key, num_classes, hidden_dim, embedding_dim):
    H, E, C = hidden_dim, embedding_dim, num_classes
    ks = jax.random.split(key, 10)
    s = 1.0 / np.sqrt(H)

    def u(k, shape):
        return jax.random.uniform(k, shape, jnp.float32, minval=-s, maxval=s)

    return {
        "embedding": jax.random.normal(ks[0], (C, E), jnp.float32),
        # weights pre-transposed to (in, 4H) / (in, C); biases = b_ih + b_hh folded
        "wih1_t": u(ks[1], (E, 4 * H)),
        "whh1_t": u(ks[2], (H, 4 * H)),
        "b1":     u(ks[3], (1, 4 * H)),
        "wih2_t": u(ks[4], (H, 4 * H)),
        "whh2_t": u(ks[5], (H, 4 * H)),
        "b2":     u(ks[6], (1, 4 * H)),
        "wfc_t":  u(ks[7], (H, C)),
        "bfc":    u(ks[8], (1, C)),
    }


if __name__ == "__main__":
    NUM_CLASSES = 32
    HIDDEN = 32
    EMB = 8
    B, T = 8, 8

    key = jax.random.PRNGKey(0)
    pkey, xkey = jax.random.split(key)
    params = init_params(pkey, NUM_CLASSES, HIDDEN, EMB)
    X_batch = jax.random.randint(xkey, (B, T), 0, NUM_CLASSES, dtype=jnp.int32)

    out = simple_lstm_forward(X_batch, params)
    out = jax.block_until_ready(out)

    ref = reference_forward(X_batch, params)
    np.testing.assert_allclose(np.asarray(out), np.asarray(ref),
                               rtol=1e-4, atol=1e-4)

    assert out.shape == (B, NUM_CLASSES)
    print("KERNEL_OK")
</pallas_src>

<mosaic_0001>
module attributes {stable_mosaic.version = 11 : i64} {
  func.func @lstm_kernel(%arg0: i32, %arg1: memref<64x8xf32, #tpu.memory_space<vmem>>, %arg2: memref<8x128xf32, #tpu.memory_space<vmem>>, %arg3: memref<32x128xf32, #tpu.memory_space<vmem>>, %arg4: memref<1x128xf32, #tpu.memory_space<vmem>>, %arg5: memref<64x128xf32, #tpu.memory_space<vmem>>, %arg6: memref<1x128xf32, #tpu.memory_space<vmem>>, %arg7: memref<32x128xf32, #tpu.memory_space<vmem>>, %arg8: memref<1x128xf32, #tpu.memory_space<vmem>>, %arg9: memref<8x128xf32, #tpu.memory_space<vmem>>, %arg10: memref<64x128xf32, #tpu.memory_space<vmem>>) attributes {dimension_semantics = [#tpu.dimension_semantics<arbitrary>], iteration_bounds = array<i64: 1>, scalar_prefetch = 0 : i64, scratch_operands = 1 : i64, tpu.core_type = #tpu.core_type<tc>, window_params = [{pipeline_mode = #tpu.pipeline_mode<synchronous>, transform_indices = @transform_0, window_bounds = array<i64: 64, 8>}, {pipeline_mode = #tpu.pipeline_mode<synchronous>, transform_indices = @transform_1, window_bounds = array<i64: 8, 128>}, {pipeline_mode = #tpu.pipeline_mode<synchronous>, transform_indices = @transform_2, window_bounds = array<i64: 32, 128>}, {pipeline_mode = #tpu.pipeline_mode<synchronous>, transform_indices = @transform_3, window_bounds = array<i64: 1, 128>}, {pipeline_mode = #tpu.pipeline_mode<synchronous>, transform_indices = @transform_4, window_bounds = array<i64: 64, 128>}, {pipeline_mode = #tpu.pipeline_mode<synchronous>, transform_indices = @transform_5, window_bounds = array<i64: 1, 128>}, {pipeline_mode = #tpu.pipeline_mode<synchronous>, transform_indices = @transform_6, window_bounds = array<i64: 32, 128>}, {pipeline_mode = #tpu.pipeline_mode<synchronous>, transform_indices = @transform_7, window_bounds = array<i64: 1, 128>}, {pipeline_mode = #tpu.pipeline_mode<synchronous>, transform_indices = @transform_8, window_bounds = array<i64: 8, 128>}]} {
    %c0 = arith.constant 0 : index
    %c0_0 = arith.constant 0 : index
    %0 = vector.load %arg1[%c0, %c0_0] : memref<64x8xf32, #tpu.memory_space<vmem>>, vector<64x8xf32>
    %c0_1 = arith.constant 0 : index
    %c0_2 = arith.constant 0 : index
    %1 = vector.load %arg2[%c0_1, %c0_2] : memref<8x128xf32, #tpu.memory_space<vmem>>, vector<8x128xf32>
    %cst = arith.constant dense<0.000000e+00> : vector<64x128xf32>
    %2 = tpu.matmul %0, %1, %cst {dimension_numbers = #tpu.dot_dimension_numbers<[1], [0], [0], [1], [0, 0, 1, 1], [], []>} : vector<64x8xf32>, vector<8x128xf32>, vector<64x128xf32> -> vector<64x128xf32>
    %c0_3 = arith.constant 0 : index
    %c0_4 = arith.constant 0 : index
    %3 = vector.load %arg4[%c0_3, %c0_4] : memref<1x128xf32, #tpu.memory_space<vmem>>, vector<1x128xf32>
    %4 = vector.broadcast %3 : vector<1x128xf32> to vector<64x128xf32>
    %5 = arith.addf %2, %4 : vector<64x128xf32>
    %c0_5 = arith.constant 0 : index
    %c0_6 = arith.constant 0 : index
    %6 = vector.load %arg10[%c0_5, %c0_6] : memref<64x128xf32, #tpu.memory_space<vmem>>, vector<64x128xf32>
    tpu.vector_store %arg10[%c0_5, %c0_6], %5 {strides = array<i32>} : memref<64x128xf32, #tpu.memory_space<vmem>>, vector<64x128xf32>,
    %c0_7 = arith.constant 0 : index
    %c0_8 = arith.constant 0 : index
    %7 = vector.load %arg3[%c0_7, %c0_8] : memref<32x128xf32, #tpu.memory_space<vmem>>, vector<32x128xf32>
    %c0_9 = arith.constant 0 : index
    %c0_10 = arith.constant 0 : index
    %8 = vector.load %arg5[%c0_9, %c0_10] : memref<64x128xf32, #tpu.memory_space<vmem>>, vector<64x128xf32>
    %c0_11 = arith.constant 0 : index
    %c0_12 = arith.constant 0 : index
    %9 = vector.load %arg6[%c0_11, %c0_12] : memref<1x128xf32, #tpu.memory_space<vmem>>, vector<1x128xf32>
    %cst_13 = arith.constant 0.000000e+00 : f32
    %10 = vector.broadcast %cst_13 : f32 to vector<8x32xf32>
    %c0_i32 = arith.constant 0 : i32
    %c8_i32 = arith.constant 8 : i32
    %11 = arith.muli %c0_i32, %c8_i32 : i32
    %12 = tpu.assume_multiple %11, 8 : i32
    %13 = arith.index_cast %12 : i32 to index
    %c0_14 = arith.constant 0 : index
    %14 = vector.load %arg10[%13, %c0_14] : memref<64x128xf32, #tpu.memory_space<vmem>>, vector<8x128xf32>
    %cst_15 = arith.constant dense<0.000000e+00> : vector<8x128xf32>
    %15 = tpu.matmul %10, %7, %cst_15 {dimension_numbers = #tpu.dot_dimension_numbers<[1], [0], [0], [1], [0, 0, 1, 1], [], []>} : vector<8x32xf32>, vector<32x128xf32>, vector<8x128xf32> -> vector<8x128xf32>
    %16 = arith.addf %14, %15 : vector<8x128xf32>
    %17 = arith.negf %16 : vector<8x128xf32>
    %18 = math.exp %17 : vector<8x128xf32>
    %cst_16 = arith.constant 1.000000e+00 : f32
    %19 = vector.broadcast %cst_16 : f32 to vector<8x128xf32>
    %20 = arith.addf %19, %18 : vector<8x128xf32>
    %21 = arith.divf %19, %20 : vector<8x128xf32>
    %22 = math.tanh %16 : vector<8x128xf32>
    %23 = vector.extract_strided_slice %21 {offsets = [0, 0], sizes = [8, 32], strides = [1, 1]} : vector<8x128xf32> to vector<8x32xf32>
    %24 = vector.extract_strided_slice %21 {offsets = [0, 32], sizes = [8, 32], strides = [1, 1]} : vector<8x128xf32> to vector<8x32xf32>
    %25 = vector.extract_strided_slice %21 {offsets = [0, 96], sizes = [8, 32], strides = [1, 1]} : vector<8x128xf32> to vector<8x32xf32>
    %26 = vector.extract_strided_slice %22 {offsets = [0, 64], sizes = [8, 32], strides = [1, 1]} : vector<8x128xf32> to vector<8x32xf32>
    %27 = arith.mulf %24, %10 : vector<8x32xf32>
    %28 = arith.mulf %23, %26 : vector<8x32xf32>
    %29 = arith.addf %27, %28 : vector<8x32xf32>
    %30 = math.tanh %29 : vector<8x32xf32>
    %31 = arith.mulf %25, %30 : vector<8x32xf32>
    %32 = tpu.concatenate %31, %10 in 1 : vector<8x32xf32>, vector<8x32xf32> -> vector<8x64xf32>
    %cst_17 = arith.constant dense<0.000000e+00> : vector<8x128xf32>
    %33 = tpu.matmul %32, %8, %cst_17 {dimension_numbers = #tpu.dot_dimension_numbers<[1], [0], [0], [1], [0, 0, 1, 1], [], []>} : vector<8x64xf32>, vector<64x128xf32>, vector<8x128xf32> -> vector<8x128xf32>
    %34 = vector.broadcast %9 : vector<1x128xf32> to vector<8x128xf32>
    %35 = arith.addf %33, %34 : vector<8x128xf32>
    %36 = arith.negf %35 : vector<8x128xf32>
    %37 = math.exp %36 : vector<8x128xf32>
    %cst_18 = arith.constant 1.000000e+00 : f32
    %38 = vector.broadcast %cst_18 : f32 to vector<8x128xf32>
    %39 = arith.addf %38, %37 : vector<8x128xf32>
    %40 = arith.divf %38, %39 : vector<8x128xf32>
    %41 = math.tanh %35 : vector<8x128xf32>
    %42 = vector.extract_strided_slice %40 {offsets = [0, 0], sizes = [8, 32], strides = [1, 1]} : vector<8x128xf32> to vector<8x32xf32>
    %43 = vector.extract_strided_slice %40 {offsets = [0, 32], sizes = [8, 32], strides = [1, 1]} : vector<8x128xf32> to vector<8x32xf32>
    %44 = vector.extract_strided_slice %40 {offsets = [0, 96], sizes = [8, 32], strides = [1, 1]} : vector<8x128xf32> to vector<8x32xf32>
    %45 = vector.extract_strided_slice %41 {offsets = [0, 64], sizes = [8, 32], strides = [1, 1]} : vector<8x128xf32> to vector<8x32xf32>
    %46 = arith.mulf %43, %10 : vector<8x32xf32>
    %47 = arith.mulf %42, %45 : vector<8x32xf32>
    %48 = arith.addf %46, %47 : vector<8x32xf32>
    %49 = math.tanh %48 : vector<8x32xf32>
    %50 = arith.mulf %44, %49 : vector<8x32xf32>
    %c1_i32 = arith.constant 1 : i32
    %c8_i32_19 = arith.constant 8 : i32
    %51 = arith.muli %c1_i32, %c8_i32_19 : i32
    %52 = tpu.assume_multiple %51, 8 : i32
    %53 = arith.index_cast %52 : i32 to index
    %c0_20 = arith.constant 0 : index
    %54 = vector.load %arg10[%53, %c0_20] : memref<64x128xf32, #tpu.memory_space<vmem>>, vector<8x128xf32>
    %cst_21 = arith.constant dense<0.000000e+00> : vector<8x128xf32>
    %55 = tpu.matmul %31, %7, %cst_21 {dimension_numbers = #tpu.dot_dimension_numbers<[1], [0], [0], [1], [0, 0, 1, 1], [], []>} : vector<8x32xf32>, vector<32x128xf32>, vector<8x128xf32> -> vector<8x128xf32>
    %56 = arith.addf %54, %55 : vector<8x128xf32>
    %57 = arith.negf %56 : vector<8x128xf32>
    %58 = math.exp %57 : vector<8x128xf32>
    %cst_22 = arith.constant 1.000000e+00 : f32
    %59 = vector.broadcast %cst_22 : f32 to vector<8x128xf32>
    %60 = arith.addf %59, %58 : vector<8x128xf32>
    %61 = arith.divf %59, %60 : vector<8x128xf32>
    %62 = math.tanh %56 : vector<8x128xf32>
    %63 = vector.extract_strided_slice %61 {offsets = [0, 0], sizes = [8, 32], strides = [1, 1]} : vector<8x128xf32> to vector<8x32xf32>
    %64 = vector.extract_strided_slice %61 {offsets = [0, 32], sizes = [8, 32], strides = [1, 1]} : vector<8x128xf32> to vector<8x32xf32>
    %65 = vector.extract_strided_slice %61 {offsets = [0, 96], sizes = [8, 32], strides = [1, 1]} : vector<8x128xf32> to vector<8x32xf32>
    %66 = vector.extract_strided_slice %62 {offsets = [0, 64], sizes = [8, 32], strides = [1, 1]} : vector<8x128xf32> to vector<8x32xf32>
    %67 = arith.mulf %64, %29 : vector<8x32xf32>
    %68 = arith.mulf %63, %66 : vector<8x32xf32>
    %69 = arith.addf %67, %68 : vector<8x32xf32>
    %70 = math.tanh %69 : vector<8x32xf32>
    %71 = arith.mulf %65, %70 : vector<8x32xf32>
    %72 = tpu.concatenate %71, %50 in 1 : vector<8x32xf32>, vector<8x32xf32> -> vector<8x64xf32>
    %cst_23 = arith.constant dense<0.000000e+00> : vector<8x128xf32>
    %73 = tpu.matmul %72, %8, %cst_23 {dimension_numbers = #tpu.dot_dimension_numbers<[1], [0], [0], [1], [0, 0, 1, 1], [], []>} : vector<8x64xf32>, vector<64x128xf32>, vector<8x128xf32> -> vector<8x128xf32>
    %74 = vector.broadcast %9 : vector<1x128xf32> to vector<8x128xf32>
    %75 = arith.addf %73, %74 : vector<8x128xf32>
    %76 = arith.negf %75 : vector<8x128xf32>
    %77 = math.exp %76 : vector<8x128xf32>
    %cst_24 = arith.constant 1.000000e+00 : f32
    %78 = vector.broadcast %cst_24 : f32 to vector<8x128xf32>
    %79 = arith.addf %78, %77 : vector<8x128xf32>
    %80 = arith.divf %78, %79 : vector<8x128xf32>
    %81 = math.tanh %75 : vector<8x128xf32>
    %82 = vector.extract_strided_slice %80 {offsets = [0, 0], sizes = [8, 32], strides = [1, 1]} : vector<8x128xf32> to vector<8x32xf32>
    %83 = vector.extract_strided_slice %80 {offsets = [0, 32], sizes = [8, 32], strides = [1, 1]} : vector<8x128xf32> to vector<8x32xf32>
    %84 = vector.extract_strided_slice %80 {offsets = [0, 96], sizes = [8, 32], strides = [1, 1]} : vector<8x128xf32> to vector<8x32xf32>
    %85 = vector.extract_strided_slice %81 {offsets = [0, 64], sizes = [8, 32], strides = [1, 1]} : vector<8x128xf32> to vector<8x32xf32>
    %86 = arith.mulf %83, %48 : vector<8x32xf32>
    %87 = arith.mulf %82, %85 : vector<8x32xf32>
    %88 = arith.addf %86, %87 : vector<8x32xf32>
    %89 = math.tanh %88 : vector<8x32xf32>
    %90 = arith.mulf %84, %89 : vector<8x32xf32>
    %c2_i32 = arith.constant 2 : i32
    %c8_i32_25 = arith.constant 8 : i32
    %91 = arith.muli %c2_i32, %c8_i32_25 : i32
    %92 = tpu.assume_multiple %91, 8 : i32
    %93 = arith.index_cast %92 : i32 to index
    %c0_26 = arith.constant 0 : index
    %94 = vector.load %arg10[%93, %c0_26] : memref<64x128xf32, #tpu.memory_space<vmem>>, vector<8x128xf32>
    %cst_27 = arith.constant dense<0.000000e+00> : vector<8x128xf32>
    %95 = tpu.matmul %71, %7, %cst_27 {dimension_numbers = #tpu.dot_dimension_numbers<[1], [0], [0], [1], [0, 0, 1, 1], [], []>} : vector<8x32xf32>, vector<32x128xf32>, vector<8x128xf32> -> vector<8x128xf32>
    %96 = arith.addf %94, %95 : vector<8x128xf32>
    %97 = arith.negf %96 : vector<8x128xf32>
    %98 = math.exp %97 : vector<8x128xf32>
    %cst_28 = arith.constant 1.000000e+00 : f32
    %99 = vector.broadcast %cst_28 : f32 to vector<8x128xf32>
    %100 = arith.addf %99, %98 : vector<8x128xf32>
    %101 = arith.divf %99, %100 : vector<8x128xf32>
    %102 = math.tanh %96 : vector<8x128xf32>
    %103 = vector.extract_strided_slice %101 {offsets = [0, 0], sizes = [8, 32], strides = [1, 1]} : vector<8x128xf32> to vector<8x32xf32>
    %104 = vector.extract_strided_slice %101 {offsets = [0, 32], sizes = [8, 32], strides = [1, 1]} : vector<8x128xf32> to vector<8x32xf32>
    %105 = vector.extract_strided_slice %101 {offsets = [0, 96], sizes = [8, 32], strides = [1, 1]} : vector<8x128xf32> to vector<8x32xf32>
    %106 = vector.extract_strided_slice %102 {offsets = [0, 64], sizes = [8, 32], strides = [1, 1]} : vector<8x128xf32> to vector<8x32xf32>
    %107 = arith.mulf %104, %69 : vector<8x32xf32>
    %108 = arith.mulf %103, %106 : vector<8x32xf32>
    %109 = arith.addf %107, %108 : vector<8x32xf32>
    %110 = math.tanh %109 : vector<8x32xf32>
    %111 = arith.mulf %105, %110 : vector<8x32xf32>
    %112 = tpu.concatenate %111, %90 in 1 : vector<8x32xf32>, vector<8x32xf32> -> vector<8x64xf32>
    %cst_29 = arith.constant dense<0.000000e+00> : vector<8x128xf32>
    %113 = tpu.matmul %112, %8, %cst_29 {dimension_numbers = #tpu.dot_dimension_numbers<[1], [0], [0], [1], [0, 0, 1, 1], [], []>} : vector<8x64xf32>, vector<64x128xf32>, vector<8x128xf32> -> vector<8x128xf32>
    %114 = vector.broadcast %9 : vector<1x128xf32> to vector<8x128xf32>
    %115 = arith.addf %113, %114 : vector<8x128xf32>
    %116 = arith.negf %115 : vector<8x128xf32>
    %117 = math.exp %116 : vector<8x128xf32>
    %cst_30 = arith.constant 1.000000e+00 : f32
    %118 = vector.broadcast %cst_30 : f32 to vector<8x128xf32>
    %119 = arith.addf %118, %117 : vector<8x128xf32>
    %120 = arith.divf %118, %119 : vector<8x128xf32>
    %121 = math.tanh %115 : vector<8x128xf32>
    %122 = vector.extract_strided_slice %120 {offsets = [0, 0], sizes = [8, 32], strides = [1, 1]} : vector<8x128xf32> to vector<8x32xf32>
    %123 = vector.extract_strided_slice %120 {offsets = [0, 32], sizes = [8, 32], strides = [1, 1]} : vector<8x128xf32> to vector<8x32xf32>
    %124 = vector.extract_strided_slice %120 {offsets = [0, 96], sizes = [8, 32], strides = [1, 1]} : vector<8x128xf32> to vector<8x32xf32>
    %125 = vector.extract_strided_slice %121 {offsets = [0, 64], sizes = [8, 32], strides = [1, 1]} : vector<8x128xf32> to vector<8x32xf32>
    %126 = arith.mulf %123, %88 : vector<8x32xf32>
    %127 = arith.mulf %122, %125 : vector<8x32xf32>
    %128 = arith.addf %126, %127 : vector<8x32xf32>
    %129 = math.tanh %128 : vector<8x32xf32>
    %130 = arith.mulf %124, %129 : vector<8x32xf32>
    %c3_i32 = arith.constant 3 : i32
    %c8_i32_31 = arith.constant 8 : i32
    %131 = arith.muli %c3_i32, %c8_i32_31 : i32
    %132 = tpu.assume_multiple %131, 8 : i32
    %133 = arith.index_cast %132 : i32 to index
    %c0_32 = arith.constant 0 : index
    %134 = vector.load %arg10[%133, %c0_32] : memref<64x128xf32, #tpu.memory_space<vmem>>, vector<8x128xf32>
    %cst_33 = arith.constant dense<0.000000e+00> : vector<8x128xf32>
    %135 = tpu.matmul %111, %7, %cst_33 {dimension_numbers = #tpu.dot_dimension_numbers<[1], [0], [0], [1], [0, 0, 1, 1], [], []>} : vector<8x32xf32>, vector<32x128xf32>, vector<8x128xf32> -> vector<8x128xf32>
    %136 = arith.addf %134, %135 : vector<8x128xf32>
    %137 = arith.negf %136 : vector<8x128xf32>
    %138 = math.exp %137 : vector<8x128xf32>
    %cst_34 = arith.constant 1.000000e+00 : f32
    %139 = vector.broadcast %cst_34 : f32 to vector<8x128xf32>
    %140 = arith.addf %139, %138 : vector<8x128xf32>
    %141 = arith.divf %139, %140 : vector<8x128xf32>
    %142 = math.tanh %136 : vector<8x128xf32>
    %143 = vector.extract_strided_slice %141 {offsets = [0, 0], sizes = [8, 32], strides = [1, 1]} : vector<8x128xf32> to vector<8x32xf32>
    %144 = vector.extract_strided_slice %141 {offsets = [0, 32], sizes = [8, 32], strides = [1, 1]} : vector<8x128xf32> to vector<8x32xf32>
    %145 = vector.extract_strided_slice %141 {offsets = [0, 96], sizes = [8, 32], strides = [1, 1]} : vector<8x128xf32> to vector<8x32xf32>
    %146 = vector.extract_strided_slice %142 {offsets = [0, 64], sizes = [8, 32], strides = [1, 1]} : vector<8x128xf32> to vector<8x32xf32>
    %147 = arith.mulf %144, %109 : vector<8x32xf32>
    %148 = arith.mulf %143, %146 : vector<8x32xf32>
    %149 = arith.addf %147, %148 : vector<8x32xf32>
    %150 = math.tanh %149 : vector<8x32xf32>
    %151 = arith.mulf %145, %150 : vector<8x32xf32>
    %152 = tpu.concatenate %151, %130 in 1 : vector<8x32xf32>, vector<8x32xf32> -> vector<8x64xf32>
    %cst_35 = arith.constant dense<0.000000e+00> : vector<8x128xf32>
    %153 = tpu.matmul %152, %8, %cst_35 {dimension_numbers = #tpu.dot_dimension_numbers<[1], [0], [0], [1], [0, 0, 1, 1], [], []>} : vector<8x64xf32>, vector<64x128xf32>, vector<8x128xf32> -> vector<8x128xf32>
    %154 = vector.broadcast %9 : vector<1x128xf32> to vector<8x128xf32>
    %155 = arith.addf %153, %154 : vector<8x128xf32>
    %156 = arith.negf %155 : vector<8x128xf32>
    %157 = math.exp %156 : vector<8x128xf32>
    %cst_36 = arith.constant 1.000000e+00 : f32
    %158 = vector.broadcast %cst_36 : f32 to vector<8x128xf32>
    %159 = arith.addf %158, %157 : vector<8x128xf32>
    %160 = arith.divf %158, %159 : vector<8x128xf32>
    %161 = math.tanh %155 : vector<8x128xf32>
    %162 = vector.extract_strided_slice %160 {offsets = [0, 0], sizes = [8, 32], strides = [1, 1]} : vector<8x128xf32> to vector<8x32xf32>
    %163 = vector.extract_strided_slice %160 {offsets = [0, 32], sizes = [8, 32], strides = [1, 1]} : vector<8x128xf32> to vector<8x32xf32>
    %164 = vector.extract_strided_slice %160 {offsets = [0, 96], sizes = [8, 32], strides = [1, 1]} : vector<8x128xf32> to vector<8x32xf32>
    %165 = vector.extract_strided_slice %161 {offsets = [0, 64], sizes = [8, 32], strides = [1, 1]} : vector<8x128xf32> to vector<8x32xf32>
    %166 = arith.mulf %163, %128 : vector<8x32xf32>
    %167 = arith.mulf %162, %165 : vector<8x32xf32>
    %168 = arith.addf %166, %167 : vector<8x32xf32>
    %169 = math.tanh %168 : vector<8x32xf32>
    %170 = arith.mulf %164, %169 : vector<8x32xf32>
    %c4_i32 = arith.constant 4 : i32
    %c8_i32_37 = arith.constant 8 : i32
    %171 = arith.muli %c4_i32, %c8_i32_37 : i32
    %172 = tpu.assume_multiple %171, 8 : i32
    %173 = arith.index_cast %172 : i32 to index
    %c0_38 = arith.constant 0 : index
    %174 = vector.load %arg10[%173, %c0_38] : memref<64x128xf32, #tpu.memory_space<vmem>>, vector<8x128xf32>
    %cst_39 = arith.constant dense<0.000000e+00> : vector<8x128xf32>
    %175 = tpu.matmul %151, %7, %cst_39 {dimension_numbers = #tpu.dot_dimension_numbers<[1], [0], [0], [1], [0, 0, 1, 1], [], []>} : vector<8x32xf32>, vector<32x128xf32>, vector<8x128xf32> -> vector<8x128xf32>
    %176 = arith.addf %174, %175 : vector<8x128xf32>
    %177 = arith.negf %176 : vector<8x128xf32>
    %178 = math.exp %177 : vector<8x128xf32>
    %cst_40 = arith.constant 1.000000e+00 : f32
    %179 = vector.broadcast %cst_40 : f32 to vector<8x128xf32>
    %180 = arith.addf %179, %178 : vector<8x128xf32>
    %181 = arith.divf %179, %180 : vector<8x128xf32>
    %182 = math.tanh %176 : vector<8x128xf32>
    %183 = vector.extract_strided_slice %181 {offsets = [0, 0], sizes = [8, 32], strides = [1, 1]} : vector<8x128xf32> to vector<8x32xf32>
    %184 = vector.extract_strided_slice %181 {offsets = [0, 32], sizes = [8, 32], strides = [1, 1]} : vector<8x128xf32> to vector<8x32xf32>
    %185 = vector.extract_strided_slice %181 {offsets = [0, 96], sizes = [8, 32], strides = [1, 1]} : vector<8x128xf32> to vector<8x32xf32>
    %186 = vector.extract_strided_slice %182 {offsets = [0, 64], sizes = [8, 32], strides = [1, 1]} : vector<8x128xf32> to vector<8x32xf32>
    %187 = arith.mulf %184, %149 : vector<8x32xf32>
    %188 = arith.mulf %183, %186 : vector<8x32xf32>
    %189 = arith.addf %187, %188 : vector<8x32xf32>
    %190 = math.tanh %189 : vector<8x32xf32>
    %191 = arith.mulf %185, %190 : vector<8x32xf32>
    %192 = tpu.concatenate %191, %170 in 1 : vector<8x32xf32>, vector<8x32xf32> -> vector<8x64xf32>
    %cst_41 = arith.constant dense<0.000000e+00> : vector<8x128xf32>
    %193 = tpu.matmul %192, %8, %cst_41 {dimension_numbers = #tpu.dot_dimension_numbers<[1], [0], [0], [1], [0, 0, 1, 1], [], []>} : vector<8x64xf32>, vector<64x128xf32>, vector<8x128xf32> -> vector<8x128xf32>
    %194 = vector.broadcast %9 : vector<1x128xf32> to vector<8x128xf32>
    %195 = arith.addf %193, %194 : vector<8x128xf32>
    %196 = arith.negf %195 : vector<8x128xf32>
    %197 = math.exp %196 : vector<8x128xf32>
    %cst_42 = arith.constant 1.000000e+00 : f32
    %198 = vector.broadcast %cst_42 : f32 to vector<8x128xf32>
    %199 = arith.addf %198, %197 : vector<8x128xf32>
    %200 = arith.divf %198, %199 : vector<8x128xf32>
    %201 = math.tanh %195 : vector<8x128xf32>
    %202 = vector.extract_strided_slice %200 {offsets = [0, 0], sizes = [8, 32], strides = [1, 1]} : vector<8x128xf32> to vector<8x32xf32>
    %203 = vector.extract_strided_slice %200 {offsets = [0, 32], sizes = [8, 32], strides = [1, 1]} : vector<8x128xf32> to vector<8x32xf32>
    %204 = vector.extract_strided_slice %200 {offsets = [0, 96], sizes = [8, 32], strides = [1, 1]} : vector<8x128xf32> to vector<8x32xf32>
    %205 = vector.extract_strided_slice %201 {offsets = [0, 64], sizes = [8, 32], strides = [1, 1]} : vector<8x128xf32> to vector<8x32xf32>
    %206 = arith.mulf %203, %168 : vector<8x32xf32>
    %207 = arith.mulf %202, %205 : vector<8x32xf32>
    %208 = arith.addf %206, %207 : vector<8x32xf32>
    %209 = math.tanh %208 : vector<8x32xf32>
    %210 = arith.mulf %204, %209 : vector<8x32xf32>
    %c5_i32 = arith.constant 5 : i32
    %c8_i32_43 = arith.constant 8 : i32
    %211 = arith.muli %c5_i32, %c8_i32_43 : i32
    %212 = tpu.assume_multiple %211, 8 : i32
    %213 = arith.index_cast %212 : i32 to index
    %c0_44 = arith.constant 0 : index
    %214 = vector.load %arg10[%213, %c0_44] : memref<64x128xf32, #tpu.memory_space<vmem>>, vector<8x128xf32>
    %cst_45 = arith.constant dense<0.000000e+00> : vector<8x128xf32>
    %215 = tpu.matmul %191, %7, %cst_45 {dimension_numbers = #tpu.dot_dimension_numbers<[1], [0], [0], [1], [0, 0, 1, 1], [], []>} : vector<8x32xf32>, vector<32x128xf32>, vector<8x128xf32> -> vector<8x128xf32>
    %216 = arith.addf %214, %215 : vector<8x128xf32>
    %217 = arith.negf %216 : vector<8x128xf32>
    %218 = math.exp %217 : vector<8x128xf32>
    %cst_46 = arith.constant 1.000000e+00 : f32
    %219 = vector.broadcast %cst_46 : f32 to vector<8x128xf32>
    %220 = arith.addf %219, %218 : vector<8x128xf32>
    %221 = arith.divf %219, %220 : vector<8x128xf32>
    %222 = math.tanh %216 : vector<8x128xf32>
    %223 = vector.extract_strided_slice %221 {offsets = [0, 0], sizes = [8, 32], strides = [1, 1]} : vector<8x128xf32> to vector<8x32xf32>
    %224 = vector.extract_strided_slice %221 {offsets = [0, 32], sizes = [8, 32], strides = [1, 1]} : vector<8x128xf32> to vector<8x32xf32>
    %225 = vector.extract_strided_slice %221 {offsets = [0, 96], sizes = [8, 32], strides = [1, 1]} : vector<8x128xf32> to vector<8x32xf32>
    %226 = vector.extract_strided_slice %222 {offsets = [0, 64], sizes = [8, 32], strides = [1, 1]} : vector<8x128xf32> to vector<8x32xf32>
    %227 = arith.mulf %224, %189 : vector<8x32xf32>
    %228 = arith.mulf %223, %226 : vector<8x32xf32>
    %229 = arith.addf %227, %228 : vector<8x32xf32>
    %230 = math.tanh %229 : vector<8x32xf32>
    %231 = arith.mulf %225, %230 : vector<8x32xf32>
    %232 = tpu.concatenate %231, %210 in 1 : vector<8x32xf32>, vector<8x32xf32> -> vector<8x64xf32>
    %cst_47 = arith.constant dense<0.000000e+00> : vector<8x128xf32>
    %233 = tpu.matmul %232, %8, %cst_47 {dimension_numbers = #tpu.dot_dimension_numbers<[1], [0], [0], [1], [0, 0, 1, 1], [], []>} : vector<8x64xf32>, vector<64x128xf32>, vector<8x128xf32> -> vector<8x128xf32>
    %234 = vector.broadcast %9 : vector<1x128xf32> to vector<8x128xf32>
    %235 = arith.addf %233, %234 : vector<8x128xf32>
    %236 = arith.negf %235 : vector<8x128xf32>
    %237 = math.exp %236 : vector<8x128xf32>
    %cst_48 = arith.constant 1.000000e+00 : f32
    %238 = vector.broadcast %cst_48 : f32 to vector<8x128xf32>
    %239 = arith.addf %238, %237 : vector<8x128xf32>
    %240 = arith.divf %238, %239 : vector<8x128xf32>
    %241 = math.tanh %235 : vector<8x128xf32>
    %242 = vector.extract_strided_slice %240 {offsets = [0, 0], sizes = [8, 32], strides = [1, 1]} : vector<8x128xf32> to vector<8x32xf32>
    %243 = vector.extract_strided_slice %240 {offsets = [0, 32], sizes = [8, 32], strides = [1, 1]} : vector<8x128xf32> to vector<8x32xf32>
    %244 = vector.extract_strided_slice %240 {offsets = [0, 96], sizes = [8, 32], strides = [1, 1]} : vector<8x128xf32> to vector<8x32xf32>
    %245 = vector.extract_strided_slice %241 {offsets = [0, 64], sizes = [8, 32], strides = [1, 1]} : vector<8x128xf32> to vector<8x32xf32>
    %246 = arith.mulf %243, %208 : vector<8x32xf32>
    %247 = arith.mulf %242, %245 : vector<8x32xf32>
    %248 = arith.addf %246, %247 : vector<8x32xf32>
    %249 = math.tanh %248 : vector<8x32xf32>
    %250 = arith.mulf %244, %249 : vector<8x32xf32>
    %c6_i32 = arith.constant 6 : i32
    %c8_i32_49 = arith.constant 8 : i32
    %251 = arith.muli %c6_i32, %c8_i32_49 : i32
    %252 = tpu.assume_multiple %251, 8 : i32
    %253 = arith.index_cast %252 : i32 to index
    %c0_50 = arith.constant 0 : index
    %254 = vector.load %arg10[%253, %c0_50] : memref<64x128xf32, #tpu.memory_space<vmem>>, vector<8x128xf32>
    %cst_51 = arith.constant dense<0.000000e+00> : vector<8x128xf32>
    %255 = tpu.matmul %231, %7, %cst_51 {dimension_numbers = #tpu.dot_dimension_numbers<[1], [0], [0], [1], [0, 0, 1, 1], [], []>} : vector<8x32xf32>, vector<32x128xf32>, vector<8x128xf32> -> vector<8x128xf32>
    %256 = arith.addf %254, %255 : vector<8x128xf32>
    %257 = arith.negf %256 : vector<8x128xf32>
    %258 = math.exp %257 : vector<8x128xf32>
    %cst_52 = arith.constant 1.000000e+00 : f32
    %259 = vector.broadcast %cst_52 : f32 to vector<8x128xf32>
    %260 = arith.addf %259, %258 : vector<8x128xf32>
    %261 = arith.divf %259, %260 : vector<8x128xf32>
    %262 = math.tanh %256 : vector<8x128xf32>
    %263 = vector.extract_strided_slice %261 {offsets = [0, 0], sizes = [8, 32], strides = [1, 1]} : vector<8x128xf32> to vector<8x32xf32>
    %264 = vector.extract_strided_slice %261 {offsets = [0, 32], sizes = [8, 32], strides = [1, 1]} : vector<8x128xf32> to vector<8x32xf32>
    %265 = vector.extract_strided_slice %261 {offsets = [0, 96], sizes = [8, 32], strides = [1, 1]} : vector<8x128xf32> to vector<8x32xf32>
    %266 = vector.extract_strided_slice %262 {offsets = [0, 64], sizes = [8, 32], strides = [1, 1]} : vector<8x128xf32> to vector<8x32xf32>
    %267 = arith.mulf %264, %229 : vector<8x32xf32>
    %268 = arith.mulf %263, %266 : vector<8x32xf32>
    %269 = arith.addf %267, %268 : vector<8x32xf32>
    %270 = math.tanh %269 : vector<8x32xf32>
    %271 = arith.mulf %265, %270 : vector<8x32xf32>
    %272 = tpu.concatenate %271, %250 in 1 : vector<8x32xf32>, vector<8x32xf32> -> vector<8x64xf32>
    %cst_53 = arith.constant dense<0.000000e+00> : vector<8x128xf32>
    %273 = tpu.matmul %272, %8, %cst_53 {dimension_numbers = #tpu.dot_dimension_numbers<[1], [0], [0], [1], [0, 0, 1, 1], [], []>} : vector<8x64xf32>, vector<64x128xf32>, vector<8x128xf32> -> vector<8x128xf32>
    %274 = vector.broadcast %9 : vector<1x128xf32> to vector<8x128xf32>
    %275 = arith.addf %273, %274 : vector<8x128xf32>
    %276 = arith.negf %275 : vector<8x128xf32>
    %277 = math.exp %276 : vector<8x128xf32>
    %cst_54 = arith.constant 1.000000e+00 : f32
    %278 = vector.broadcast %cst_54 : f32 to vector<8x128xf32>
    %279 = arith.addf %278, %277 : vector<8x128xf32>
    %280 = arith.divf %278, %279 : vector<8x128xf32>
    %281 = math.tanh %275 : vector<8x128xf32>
    %282 = vector.extract_strided_slice %280 {offsets = [0, 0], sizes = [8, 32], strides = [1, 1]} : vector<8x128xf32> to vector<8x32xf32>
    %283 = vector.extract_strided_slice %280 {offsets = [0, 32], sizes = [8, 32], strides = [1, 1]} : vector<8x128xf32> to vector<8x32xf32>
    %284 = vector.extract_strided_slice %280 {offsets = [0, 96], sizes = [8, 32], strides = [1, 1]} : vector<8x128xf32> to vector<8x32xf32>
    %285 = vector.extract_strided_slice %281 {offsets = [0, 64], sizes = [8, 32], strides = [1, 1]} : vector<8x128xf32> to vector<8x32xf32>
    %286 = arith.mulf %283, %248 : vector<8x32xf32>
    %287 = arith.mulf %282, %285 : vector<8x32xf32>
    %288 = arith.addf %286, %287 : vector<8x32xf32>
    %289 = math.tanh %288 : vector<8x32xf32>
    %290 = arith.mulf %284, %289 : vector<8x32xf32>
    %c7_i32 = arith.constant 7 : i32
    %c8_i32_55 = arith.constant 8 : i32
    %291 = arith.muli %c7_i32, %c8_i32_55 : i32
    %292 = tpu.assume_multiple %291, 8 : i32
    %293 = arith.index_cast %292 : i32 to index
    %c0_56 = arith.constant 0 : index
    %294 = vector.load %arg10[%293, %c0_56] : memref<64x128xf32, #tpu.memory_space<vmem>>, vector<8x128xf32>
    %cst_57 = arith.constant dense<0.000000e+00> : vector<8x128xf32>
    %295 = tpu.matmul %271, %7, %cst_57 {dimension_numbers = #tpu.dot_dimension_numbers<[1], [0], [0], [1], [0, 0, 1, 1], [], []>} : vector<8x32xf32>, vector<32x128xf32>, vector<8x128xf32> -> vector<8x128xf32>
    %296 = arith.addf %294, %295 : vector<8x128xf32>
    %297 = arith.negf %296 : vector<8x128xf32>
    %298 = math.exp %297 : vector<8x128xf32>
    %cst_58 = arith.constant 1.000000e+00 : f32
    %299 = vector.broadcast %cst_58 : f32 to vector<8x128xf32>
    %300 = arith.addf %299, %298 : vector<8x128xf32>
    %301 = arith.divf %299, %300 : vector<8x128xf32>
    %302 = math.tanh %296 : vector<8x128xf32>
    %303 = vector.extract_strided_slice %301 {offsets = [0, 0], sizes = [8, 32], strides = [1, 1]} : vector<8x128xf32> to vector<8x32xf32>
    %304 = vector.extract_strided_slice %301 {offsets = [0, 32], sizes = [8, 32], strides = [1, 1]} : vector<8x128xf32> to vector<8x32xf32>
    %305 = vector.extract_strided_slice %301 {offsets = [0, 96], sizes = [8, 32], strides = [1, 1]} : vector<8x128xf32> to vector<8x32xf32>
    %306 = vector.extract_strided_slice %302 {offsets = [0, 64], sizes = [8, 32], strides = [1, 1]} : vector<8x128xf32> to vector<8x32xf32>
    %307 = arith.mulf %304, %269 : vector<8x32xf32>
    %308 = arith.mulf %303, %306 : vector<8x32xf32>
    %309 = arith.addf %307, %308 : vector<8x32xf32>
    %310 = math.tanh %309 : vector<8x32xf32>
    %311 = arith.mulf %305, %310 : vector<8x32xf32>
    %312 = tpu.concatenate %311, %290 in 1 : vector<8x32xf32>, vector<8x32xf32> -> vector<8x64xf32>
    %cst_59 = arith.constant dense<0.000000e+00> : vector<8x128xf32>
    %313 = tpu.matmul %312, %8, %cst_59 {dimension_numbers = #tpu.dot_dimension_numbers<[1], [0], [0], [1], [0, 0, 1, 1], [], []>} : vector<8x64xf32>, vector<64x128xf32>, vector<8x128xf32> -> vector<8x128xf32>
    %314 = vector.broadcast %9 : vector<1x128xf32> to vector<8x128xf32>
    %315 = arith.addf %313, %314 : vector<8x128xf32>
    %316 = arith.negf %315 : vector<8x128xf32>
    %317 = math.exp %316 : vector<8x128xf32>
    %cst_60 = arith.constant 1.000000e+00 : f32
    %318 = vector.broadcast %cst_60 : f32 to vector<8x128xf32>
    %319 = arith.addf %318, %317 : vector<8x128xf32>
    %320 = arith.divf %318, %319 : vector<8x128xf32>
    %321 = math.tanh %315 : vector<8x128xf32>
    %322 = vector.extract_strided_slice %320 {offsets = [0, 0], sizes = [8, 32], strides = [1, 1]} : vector<8x128xf32> to vector<8x32xf32>
    %323 = vector.extract_strided_slice %320 {offsets = [0, 32], sizes = [8, 32], strides = [1, 1]} : vector<8x128xf32> to vector<8x32xf32>
    %324 = vector.extract_strided_slice %320 {offsets = [0, 96], sizes = [8, 32], strides = [1, 1]} : vector<8x128xf32> to vector<8x32xf32>
    %325 = vector.extract_strided_slice %321 {offsets = [0, 64], sizes = [8, 32], strides = [1, 1]} : vector<8x128xf32> to vector<8x32xf32>
    %326 = arith.mulf %323, %288 : vector<8x32xf32>
    %327 = arith.mulf %322, %325 : vector<8x32xf32>
    %328 = arith.addf %326, %327 : vector<8x32xf32>
    %329 = math.tanh %328 : vector<8x32xf32>
    %330 = arith.mulf %324, %329 : vector<8x32xf32>
    %c8_i32_61 = arith.constant 8 : i32
    %c0_62 = arith.constant 0 : index
    %c0_63 = arith.constant 0 : index
    %331 = vector.load %arg7[%c0_62, %c0_63] : memref<32x128xf32, #tpu.memory_space<vmem>>, vector<32x128xf32>
    %cst_64 = arith.constant dense<0.000000e+00> : vector<8x128xf32>
    %332 = tpu.matmul %330, %331, %cst_64 {dimension_numbers = #tpu.dot_dimension_numbers<[1], [0], [0], [1], [0, 0, 1, 1], [], []>} : vector<8x32xf32>, vector<32x128xf32>, vector<8x128xf32> -> vector<8x128xf32>
    %c0_65 = arith.constant 0 : index
    %c0_66 = arith.constant 0 : index
    %333 = vector.load %arg8[%c0_65, %c0_66] : memref<1x128xf32, #tpu.memory_space<vmem>>, vector<1x128xf32>
    %334 = vector.broadcast %333 : vector<1x128xf32> to vector<8x128xf32>
    %335 = arith.addf %332, %334 : vector<8x128xf32>
    %c0_67 = arith.constant 0 : index
    %c0_68 = arith.constant 0 : index
    %336 = vector.load %arg9[%c0_67, %c0_68] : memref<8x128xf32, #tpu.memory_space<vmem>>, vector<8x128xf32>
    tpu.vector_store %arg9[%c0_67, %c0_68], %335 {strides = array<i32>} : memref<8x128xf32, #tpu.memory_space<vmem>>, vector<8x128xf32>,
    return
  }
  func.func @transform_0(%arg0: i32) -> (i32, i32) {
    %c0_i32 = arith.constant 0 : i32
    %c0_i32_0 = arith.constant 0 : i32
    %c0_i32_1 = arith.constant 0 : i32
    return %c0_i32, %c0_i32_0 : i32, i32
  }
  func.func @transform_1(%arg0: i32) -> (i32, i32) {
    %c0_i32 = arith.constant 0 : i32
    %c0_i32_0 = arith.constant 0 : i32
    %c0_i32_1 = arith.constant 0 : i32
    return %c0_i32, %c0_i32_0 : i32, i32
  }
  func.func @transform_2(%arg0: i32) -> (i32, i32) {
    %c0_i32 = arith.constant 0 : i32
    %c0_i32_0 = arith.constant 0 : i32
    %c0_i32_1 = arith.constant 0 : i32
    return %c0_i32, %c0_i32_0 : i32, i32
  }
  func.func @transform_3(%arg0: i32) -> (i32, i32) {
    %c0_i32 = arith.constant 0 : i32
    %c0_i32_0 = arith.constant 0 : i32
    %c0_i32_1 = arith.constant 0 : i32
    return %c0_i32, %c0_i32_0 : i32, i32
  }
  func.func @transform_4(%arg0: i32) -> (i32, i32) {
    %c0_i32 = arith.constant 0 : i32
    %c0_i32_0 = arith.constant 0 : i32
    %c0_i32_1 = arith.constant 0 : i32
    return %c0_i32, %c0_i32_0 : i32, i32
  }
  func.func @transform_5(%arg0: i32) -> (i32, i32) {
    %c0_i32 = arith.constant 0 : i32
    %c0_i32_0 = arith.constant 0 : i32
    %c0_i32_1 = arith.constant 0 : i32
    return %c0_i32, %c0_i32_0 : i32, i32
  }
  func.func @transform_6(%arg0: i32) -> (i32, i32) {
    %c0_i32 = arith.constant 0 : i32
    %c0_i32_0 = arith.constant 0 : i32
    %c0_i32_1 = arith.constant 0 : i32
    return %c0_i32, %c0_i32_0 : i32, i32
  }
  func.func @transform_7(%arg0: i32) -> (i32, i32) {
    %c0_i32 = arith.constant 0 : i32
    %c0_i32_0 = arith.constant 0 : i32
    %c0_i32_1 = arith.constant 0 : i32
    return %c0_i32, %c0_i32_0 : i32, i32
  }
  func.func @transform_8(%arg0: i32) -> (i32, i32) {
    %c0_i32 = arith.constant 0 : i32
    %c0_i32_0 = arith.constant 0 : i32
    %c0_i32_1 = arith.constant 0 : i32
    return %c0_i32, %c0_i32_0 : i32, i32
  }
}

</mosaic_0001>

<llo_original>
// kernel: tpu_custom_call.1
$region0: #{tpu_custom_call.1}
  #allocation0 [shape = 'u32[]', space=smem, size = 0x4, offset = 0x4, fixed_abs, tag = 'smem constant byte address 0x4 - core index']
  #allocation1 [shape = 'u32[144,128]{1,0:T(1,128)}', space=vmem, size = 0x12000, scoped, tag = 'internal scratch']
  #allocation2 [shape = 'f32[64,128]{1,0:T(8,128)}', space=vmem, size = 0x8000, scoped, tag = 'scratch operand']
  %s0 = inlined_call_operand.vmem [shape: f32[64,8], index: 0, kind: input, shape index: {}]
  %s1 = inlined_call_operand.vmem [shape: f32[8,128], index: 1, kind: input, shape index: {}]
  %s2 = inlined_call_operand.hbm [shape: f32[32,128], index: 2, kind: input, shape index: {}]
  %s3 = inlined_call_operand.vmem [shape: f32[1,128], index: 3, kind: input, shape index: {}]
  %s4 = inlined_call_operand.vmem [shape: f32[64,128], index: 4, kind: input, shape index: {}]
  %s5 = inlined_call_operand.vmem [shape: f32[1,128], index: 5, kind: input, shape index: {}]
  %s6 = inlined_call_operand.hbm [shape: f32[32,128], index: 6, kind: input, shape index: {}]
  %s7 = inlined_call_operand.vmem [shape: f32[1,128], index: 7, kind: input, shape index: {}]
  %s8 = inlined_call_operand.hbm [shape: f32[8,128], index: 8, kind: output, shape index: {}]
  %s9 = sld [smem:[#allocation0]]
  $region50: #{tpu_custom_call.1} parent=0
    _
  %s11 = ssub.s32 1, %s9
  %s12 = scalar_select 0, %s11, %s9
  $region1: #{tpu_custom_call.1} parent=0
    #allocation3 [shape = 'u8[16384]{0}', space=vmem, size = 0x4000, scoped, tag = 'input window, operand 2, single buffered']
    #allocation4 [shape = 's32[1]{0}', space=sflag, size = 0x4, scoped, tag = 'scoped memory for tpu_custom_call.1']
    #allocation5 [shape = 's32[1]{0}', space=sflag, size = 0x4, scoped, tag = 'scoped memory for tpu_custom_call.1']
    #allocation6 [shape = 'u8[16384]{0}', space=vmem, size = 0x4000, scoped, tag = 'input window, operand 6, single buffered']
    #allocation7 [shape = 's32[1]{0}', space=sflag, size = 0x4, scoped, tag = 'scoped memory for tpu_custom_call.1']
    #allocation8 [shape = 'u8[4096]{0}', space=vmem, size = 0x1000, scoped, tag = 'output window, operand 0, single buffered']
    %13 = vsyncpa [#allocation4], 0
    %14 = vsyncpa [#allocation7], 0
    %15 = vsyncpa [#allocation5], 0
    // Predicated region
    $region2: #{tpu_custom_call.1} parent=1 // pred_check
      _
    $region3: #{tpu_custom_call.1} parent=1 // pred_check_branch
      %17 = sbr.rel (0) target = $region5
    $region4: #{tpu_custom_call.1} parent=1 // pred_region
      _
    $region5: #{tpu_custom_call.1} parent=1 // pred_fallthru
      _
    // Predicated region
    $region6: #{tpu_custom_call.1} parent=1 // pred_check
      _
    $region7: #{tpu_custom_call.1} parent=1 // pred_check_branch
      %19 = sbr.rel (0) target = $region9
    $region8: #{tpu_custom_call.1} parent=1 // pred_region
      _
    $region9: #{tpu_custom_call.1} parent=1 // pred_fallthru
      _
    // Predicated region
    $region10: #{tpu_custom_call.1} parent=1 // pred_check
      _
    $region11: #{tpu_custom_call.1} parent=1 // pred_check_branch
      %21 = sbr.rel (0) target = $region13
    $region12: #{tpu_custom_call.1} parent=1 // pred_region
      %s23 = ssub.s32 512, 512
      %24 = vsyncadd [#allocation4], %s23
      %s25 = sshll.u32 [#allocation3], 4
      %s26 = int_to_ptr.vmem [resolvable:$true] %s25
      %31 = dma.hbm_to_vmem [thread:$0]  %s2, 512, %s26, [#allocation4], 128, 128, 8
    $region13: #{tpu_custom_call.1} parent=1 // pred_fallthru
      _
    // Predicated region
    $region14: #{tpu_custom_call.1} parent=1 // pred_check
      _
    $region15: #{tpu_custom_call.1} parent=1 // pred_check_branch
      %33 = sbr.rel (0) target = $region17
    $region16: #{tpu_custom_call.1} parent=1 // pred_region
      _
    $region17: #{tpu_custom_call.1} parent=1 // pred_fallthru
      _
    // Predicated region
    $region18: #{tpu_custom_call.1} parent=1 // pred_check
      _
    $region19: #{tpu_custom_call.1} parent=1 // pred_check_branch
      %35 = sbr.rel (0) target = $region21
    $region20: #{tpu_custom_call.1} parent=1 // pred_region
      _
    $region21: #{tpu_custom_call.1} parent=1 // pred_fallthru
      _
    // Predicated region
    $region22: #{tpu_custom_call.1} parent=1 // pred_check
      _
    $region23: #{tpu_custom_call.1} parent=1 // pred_check_branch
      %37 = sbr.rel (0) target = $region25
    $region24: #{tpu_custom_call.1} parent=1 // pred_region
      _
    $region25: #{tpu_custom_call.1} parent=1 // pred_fallthru
      _
    // Predicated region
    $region26: #{tpu_custom_call.1} parent=1 // pred_check
      _
    $region27: #{tpu_custom_call.1} parent=1 // pred_check_branch
      %39 = sbr.rel (0) target = $region29
    $region28: #{tpu_custom_call.1} parent=1 // pred_region
      %s41 = ssub.s32 512, 512
      %42 = vsyncadd [#allocation7], %s41
      %s43 = sshll.u32 [#allocation6], 4
      %s44 = int_to_ptr.vmem [resolvable:$true] %s43
      %49 = dma.hbm_to_vmem [thread:$0]  %s6, 512, %s44, [#allocation7], 128, 128, 8
    $region29: #{tpu_custom_call.1} parent=1 // pred_fallthru
      _
    // Predicated region
    $region30: #{tpu_custom_call.1} parent=1 // pred_check
      _
    $region31: #{tpu_custom_call.1} parent=1 // pred_check_branch
      %51 = sbr.rel (0) target = $region33
    $region32: #{tpu_custom_call.1} parent=1 // pred_region
      _
    $region33: #{tpu_custom_call.1} parent=1 // pred_fallthru
      _
    // Predicated region
    $region34: #{tpu_custom_call.1} parent=1 // pred_check
      _
    $region35: #{tpu_custom_call.1} parent=1 // pred_check_branch
      %53 = sbr.rel (0) target = $region37
    $region36: #{tpu_custom_call.1} parent=1 // pred_region
      %54 = dma.done [#allocation4], 512
    $region37: #{tpu_custom_call.1} parent=1 // pred_fallthru
      _
    // Predicated region
    $region38: #{tpu_custom_call.1} parent=1 // pred_check
      _
    $region39: #{tpu_custom_call.1} parent=1 // pred_check_branch
      %56 = sbr.rel (0) target = $region41
    $region40: #{tpu_custom_call.1} parent=1 // pred_region
      %57 = dma.done [#allocation7], 512
    $region41: #{tpu_custom_call.1} parent=1 // pred_fallthru
      _
    %v58 = vld [vmem:[%s0] sm:$0xff]
    %v59 = vld [vmem:[%s0 + $0x8] sm:$0xff]
    %v60 = vld [vmem:[%s0 + $0x10] sm:$0xff]
    %v61 = vld [vmem:[%s0 + $0x18] sm:$0xff]
    %v62 = vld [vmem:[%s0 + $0x20] sm:$0xff]
    %v63 = vld [vmem:[%s0 + $0x28] sm:$0xff]
    %v64 = vld [vmem:[%s0 + $0x30] sm:$0xff]
    %v65 = vld [vmem:[%s0 + $0x38] sm:$0xff]
    %v66 = vld [vmem:[%s1] sm:$0xff]
    %v67 = vld [vmem:[%s3] sm:$0x1]
    %v69 = vlaneseq
    %v70 = vshrl.u32 %v69, 7
    %v71 = vsub.s32 0, %v70
    %v72 = vrot.slane %v67, %v71
    %vm74 = vcmask 64512
    %v76 = vsel %vm74, %v58, 0
    %v79 = vsel %vm74, %v59, 0
    %v82 = vsel %vm74, %v60, 0
    %v85 = vsel %vm74, %v61, 0
    %v88 = vsel %vm74, %v62, 0
    %v91 = vsel %vm74, %v63, 0
    %v94 = vsel %vm74, %v64, 0
    %v97 = vsel %vm74, %v65, 0
    %99 = vmatprep.subr.mxu0 0.0
    %100 = vmatpush1.msra.mxu0 0.0
    %101 = vmatprep.subr.mxu0 0.0
    %102 = vmatpush1.msra.mxu0 0.0
    %103 = vmatprep.subr.mxu0 0.0
    %104 = vmatpush1.msra.mxu0 0.0
    %105 = vmatprep.subr.mxu0 0.0
    %106 = vmatpush1.msra.mxu0 0.0
    %107 = vmatprep.subr.mxu0 0.0
    %108 = vmatpush1.msra.mxu0 0.0
    %109 = vmatprep.subr.mxu0 0.0
    %110 = vmatpush1.msra.mxu0 0.0
    %111 = vmatprep.subr.mxu0 0.0
    %112 = vmatpush1.msra.mxu0 0.0
    %113 = vmatprep.subr.mxu0 0.0
    %114 = vmatpush1.msra.mxu0 0.0
    %115 = vmatprep.subr.mxu0 0.0
    %116 = vmatpush1.msra.mxu0 0.0
    %117 = vmatprep.subr.mxu0 0.0
    %118 = vmatpush1.msra.mxu0 0.0
    %119 = vmatprep.subr.mxu0 0.0
    %120 = vmatpush1.msra.mxu0 0.0
    %121 = vmatprep.subr.mxu0 0.0
    %122 = vmatpush1.msra.mxu0 0.0
    %123 = vmatprep.subr.mxu0 0.0
    %124 = vmatpush1.msra.mxu0 0.0
    %125 = vmatprep.subr.mxu0 0.0
    %126 = vmatpush1.msra.mxu0 0.0
    %127 = vmatprep.subr.mxu0 0.0
    %128 = vmatpush1.msra.mxu0 0.0
    %129 = vmatprep.subr.mxu0 0.0
    %130 = vmatpush1.msra.mxu0 %v66
    %131 = vmatprep.subr.mxu0 0.0
    %132 = vmatpush2.msra.mxu0 0.0
    %133 = vmatprep.subr.mxu0 0.0
    %134 = vmatpush2.msra.mxu0 0.0
    %135 = vmatprep.subr.mxu0 0.0
    %136 = vmatpush2.msra.mxu0 0.0
    %137 = vmatprep.subr.mxu0 0.0
    %138 = vmatpush2.msra.mxu0 0.0
    %139 = vmatprep.subr.mxu0 0.0
    %140 = vmatpush2.msra.mxu0 0.0
    %141 = vmatprep.subr.mxu0 0.0
    %142 = vmatpush2.msra.mxu0 0.0
    %143 = vmatprep.subr.mxu0 0.0
    %144 = vmatpush2.msra.mxu0 0.0
    %145 = vmatprep.subr.mxu0 0.0
    %146 = vmatpush2.msra.mxu0 0.0
    %147 = vmatprep.subr.mxu0 0.0
    %148 = vmatpush2.msra.mxu0 0.0
    %149 = vmatprep.subr.mxu0 0.0
    %150 = vmatpush2.msra.mxu0 0.0
    %151 = vmatprep.subr.mxu0 0.0
    %152 = vmatpush2.msra.mxu0 0.0
    %153 = vmatprep.subr.mxu0 0.0
    %154 = vmatpush2.msra.mxu0 0.0
    %155 = vmatprep.subr.mxu0 0.0
    %156 = vmatpush2.msra.mxu0 0.0
    %157 = vmatprep.subr.mxu0 0.0
    %158 = vmatpush2.msra.mxu0 0.0
    %159 = vmatprep.subr.mxu0 0.0
    %160 = vmatpush2.msra.mxu0 0.0
    %161 = vmatprep.subr.mxu0 0.0
    %162 = vmatpush2.msra.mxu0 0.0
    %163 = vmatprep.mubr.f32.mxu0 0.0
    %164 = vmatmul.mubr.f32.gmra.mxu0 %v76
    %v165 = vpop.f32.mrf.mxu0
    %v166 = vadd.f32 %v72, %v165
    %v167 = vpop.f32.mrf.mxu0
    %168 = vmatprep.mubr.f32.mxu0 0.0
    %169 = vmatmul.mubr.f32.gmra.mxu0 %v79
    %v170 = vpop.f32.mrf.mxu0
    %v171 = vadd.f32 %v72, %v170
    %v172 = vpop.f32.mrf.mxu0
    %173 = vmatprep.mubr.f32.mxu0 0.0
    %174 = vmatmul.mubr.f32.gmra.mxu0 %v82
    %v175 = vpop.f32.mrf.mxu0
    %v176 = vadd.f32 %v72, %v175
    %v177 = vpop.f32.mrf.mxu0
    %178 = vmatprep.mubr.f32.mxu0 0.0
    %179 = vmatmul.mubr.f32.gmra.mxu0 %v85
    %v180 = vpop.f32.mrf.mxu0
    %v181 = vadd.f32 %v72, %v180
    %v182 = vpop.f32.mrf.mxu0
    %183 = vmatprep.mubr.f32.mxu0 0.0
    %184 = vmatmul.mubr.f32.gmra.mxu0 %v88
    %v185 = vpop.f32.mrf.mxu0
    %v186 = vadd.f32 %v72, %v185
    %v187 = vpop.f32.mrf.mxu0
    %188 = vmatprep.mubr.f32.mxu0 0.0
    %189 = vmatmul.mubr.f32.gmra.mxu0 %v91
    %v190 = vpop.f32.mrf.mxu0
    %v191 = vadd.f32 %v72, %v190
    %v192 = vpop.f32.mrf.mxu0
    %193 = vmatprep.mubr.f32.mxu0 0.0
    %194 = vmatmul.mubr.f32.gmra.mxu0 %v94
    %v195 = vpop.f32.mrf.mxu0
    %v196 = vadd.f32 %v72, %v195
    %v197 = vpop.f32.mrf.mxu0
    %198 = vmatprep.mubr.f32.mxu0 0.0
    %199 = vmatmul.mubr.f32.gmra.mxu0 %v97
    %v200 = vpop.f32.mrf.mxu0
    %v201 = vadd.f32 %v72, %v200
    %v202 = vpop.f32.mrf.mxu0
    %203 = vdwg.mxu0
    %204 = vst [vmem:[#allocation2] sm:$0xff] %v166
    %205 = vst [vmem:[#allocation2 + $0x8] sm:$0xff] %v171
    %206 = vst [vmem:[#allocation2 + $0x10] sm:$0xff] %v176
    %207 = vst [vmem:[#allocation2 + $0x18] sm:$0xff] %v181
    %208 = vst [vmem:[#allocation2 + $0x20] sm:$0xff] %v186
    %209 = vst [vmem:[#allocation2 + $0x28] sm:$0xff] %v191
    %210 = vst [vmem:[#allocation2 + $0x30] sm:$0xff] %v196
    %211 = vst [vmem:[#allocation2 + $0x38] sm:$0xff] %v201
    %v212 = vld [vmem:[#allocation3] sm:$0xff]
    %v213 = vld [vmem:[#allocation3 + $0x8] sm:$0xff]
    %v214 = vld [vmem:[#allocation3 + $0x10] sm:$0xff]
    %v215 = vld [vmem:[#allocation3 + $0x18] sm:$0xff]
    %v216 = vld [vmem:[%s4] sm:$0xff]
    %v217 = vld [vmem:[%s4 + $0x8] sm:$0xff]
    %v218 = vld [vmem:[%s4 + $0x10] sm:$0xff]
    %v219 = vld [vmem:[%s4 + $0x18] sm:$0xff]
    %v220 = vld [vmem:[%s4 + $0x20] sm:$0xff]
    %v221 = vld [vmem:[%s4 + $0x28] sm:$0xff]
    %v222 = vld [vmem:[%s4 + $0x30] sm:$0xff]
    %v223 = vld [vmem:[%s4 + $0x38] sm:$0xff]
    %v224 = vld [vmem:[%s5] sm:$0x1]
    %v225 = vld [vmem:[#allocation2] sm:$0xff]
    %vm226 = vcmask 261120
    %v228 = vsel %vm226, 0.0, 0
    %230 = vmatprep.subr.mxu0 0.0
    %231 = vmatpush1.msra.mxu0 0.0
    %232 = vmatprep.subr.mxu0 0.0
    %233 = vmatpush1.msra.mxu0 0.0
    %234 = vmatprep.subr.mxu0 0.0
    %235 = vmatpush1.msra.mxu0 0.0
    %236 = vmatprep.subr.mxu0 0.0
    %237 = vmatpush1.msra.mxu0 0.0
    %238 = vmatprep.subr.mxu0 0.0
    %239 = vmatpush1.msra.mxu0 0.0
    %240 = vmatprep.subr.mxu0 0.0
    %241 = vmatpush1.msra.mxu0 0.0
    %242 = vmatprep.subr.mxu0 0.0
    %243 = vmatpush1.msra.mxu0 0.0
    %244 = vmatprep.subr.mxu0 0.0
    %245 = vmatpush1.msra.mxu0 0.0
    %246 = vmatprep.subr.mxu0 0.0
    %247 = vmatpush1.msra.mxu0 0.0
    %248 = vmatprep.subr.mxu0 0.0
    %249 = vmatpush1.msra.mxu0 0.0
    %250 = vmatprep.subr.mxu0 0.0
    %251 = vmatpush1.msra.mxu0 0.0
    %252 = vmatprep.subr.mxu0 0.0
    %253 = vmatpush1.msra.mxu0 0.0
    %254 = vmatprep.subr.mxu0 0.0
    %255 = vmatpush1.msra.mxu0 %v215
    %256 = vmatprep.subr.mxu0 0.0
    %257 = vmatpush1.msra.mxu0 %v214
    %258 = vmatprep.subr.mxu0 0.0
    %259 = vmatpush1.msra.mxu0 %v213
    %260 = vmatprep.subr.mxu0 0.0
    %261 = vmatpush1.msra.mxu0 %v212
    %262 = vmatprep.subr.mxu0 0.0
    %263 = vmatpush2.msra.mxu0 0.0
    %264 = vmatprep.subr.mxu0 0.0
    %265 = vmatpush2.msra.mxu0 0.0
    %266 = vmatprep.subr.mxu0 0.0
    %267 = vmatpush2.msra.mxu0 0.0
    %268 = vmatprep.subr.mxu0 0.0
    %269 = vmatpush2.msra.mxu0 0.0
    %270 = vmatprep.subr.mxu0 0.0
    %271 = vmatpush2.msra.mxu0 0.0
    %272 = vmatprep.subr.mxu0 0.0
    %273 = vmatpush2.msra.mxu0 0.0
    %274 = vmatprep.subr.mxu0 0.0
    %275 = vmatpush2.msra.mxu0 0.0
    %276 = vmatprep.subr.mxu0 0.0
    %277 = vmatpush2.msra.mxu0 0.0
    %278 = vmatprep.subr.mxu0 0.0
    %279 = vmatpush2.msra.mxu0 0.0
    %280 = vmatprep.subr.mxu0 0.0
    %281 = vmatpush2.msra.mxu0 0.0
    %282 = vmatprep.subr.mxu0 0.0
    %283 = vmatpush2.msra.mxu0 0.0
    %284 = vmatprep.subr.mxu0 0.0
    %285 = vmatpush2.msra.mxu0 0.0
    %286 = vmatprep.subr.mxu0 0.0
    %287 = vmatpush2.msra.mxu0 0.0
    %288 = vmatprep.subr.mxu0 0.0
    %289 = vmatpush2.msra.mxu0 0.0
    %290 = vmatprep.subr.mxu0 0.0
    %291 = vmatpush2.msra.mxu0 0.0
    %292 = vmatprep.subr.mxu0 0.0
    %293 = vmatpush2.msra.mxu0 0.0
    %294 = vmatprep.mubr.f32.mxu0 0.0
    %295 = vmatmul.mubr.f32.gmra.mxu0 %v228
    %v296 = vpop.f32.mrf.mxu0
    %v297 = vadd.f32 0.0, %v296
    %v298 = vpop.f32.mrf.mxu0
    %299 = vdwg.mxu0
    %v300 = vadd.f32 %v225, %v297
    %v301 = vxor.u32 %v300, 2147483648
    %v302 = vmul.f32 %v301, 1.442695
    %v303 = vpow.pop %v302
    %v304 = vadd.f32 %v303, 1.0
    %v305 = vrcp.pop %v304
    %v306 = vmul.f32 1.0, %v305
    %v307 = vtanh.pop %v300
    %v308 = vmul.f32 %v306, 0.0
    %310 = vrot.lane.b32.xlu0 %v307, 64
    %v311 = vpop.permute.xlu0 %310
    %v313 = vmul.f32 %v306, %v311
    %315 = vrot.lane.b32.xlu0 %v313, 32
    %v316 = vpop.permute.xlu0 %315
    %v318 = vadd.f32 %v308, %v316
    %v319 = vtanh.pop %v318
    %321 = vrot.lane.b32.xlu0 %v319, 64
    %v322 = vpop.permute.xlu0 %321
    %v324 = vmul.f32 %v306, %v322
    %326 = vrot.lane.b32.xlu0 %v324, 32
    %v327 = vpop.permute.xlu0 %326
    %v329 = vsel %vm226, %v327, 0.0
    %v331 = vlaneseq
    %v332 = vshrl.u32 %v331, 7
    %v333 = vsub.s32 0, %v332
    %v334 = vrot.slane %v224, %v333
    %vm336 = vcmask 523264
    %v338 = vsel %vm336, %v329, 0
    %340 = vmatprep.subr.mxu0 0.0
    %341 = vmatpush1.msra.mxu0 0.0
    %342 = vmatprep.subr.mxu0 0.0
    %343 = vmatpush1.msra.mxu0 0.0
    %344 = vmatprep.subr.mxu0 0.0
    %345 = vmatpush1.msra.mxu0 0.0
    %346 = vmatprep.subr.mxu0 0.0
    %347 = vmatpush1.msra.mxu0 0.0
    %348 = vmatprep.subr.mxu0 0.0
    %349 = vmatpush1.msra.mxu0 0.0
    %350 = vmatprep.subr.mxu0 0.0
    %351 = vmatpush1.msra.mxu0 0.0
    %352 = vmatprep.subr.mxu0 0.0
    %353 = vmatpush1.msra.mxu0 0.0
    %354 = vmatprep.subr.mxu0 0.0
    %355 = vmatpush1.msra.mxu0 0.0
    %356 = vmatprep.subr.mxu0 0.0
    %357 = vmatpush1.msra.mxu0 %v223
    %358 = vmatprep.subr.mxu0 0.0
    %359 = vmatpush1.msra.mxu0 %v222
    %360 = vmatprep.subr.mxu0 0.0
    %361 = vmatpush1.msra.mxu0 %v221
    %362 = vmatprep.subr.mxu0 0.0
    %363 = vmatpush1.msra.mxu0 %v220
    %364 = vmatprep.subr.mxu0 0.0
    %365 = vmatpush1.msra.mxu0 %v219
    %366 = vmatprep.subr.mxu0 0.0
    %367 = vmatpush1.msra.mxu0 %v218
    %368 = vmatprep.subr.mxu0 0.0
    %369 = vmatpush1.msra.mxu0 %v217
    %370 = vmatprep.subr.mxu0 0.0
    %371 = vmatpush1.msra.mxu0 %v216
    %372 = vmatprep.subr.mxu0 0.0
    %373 = vmatpush2.msra.mxu0 0.0
    %374 = vmatprep.subr.mxu0 0.0
    %375 = vmatpush2.msra.mxu0 0.0
    %376 = vmatprep.subr.mxu0 0.0
    %377 = vmatpush2.msra.mxu0 0.0
    %378 = vmatprep.subr.mxu0 0.0
    %379 = vmatpush2.msra.mxu0 0.0
    %380 = vmatprep.subr.mxu0 0.0
    %381 = vmatpush2.msra.mxu0 0.0
    %382 = vmatprep.subr.mxu0 0.0
    %383 = vmatpush2.msra.mxu0 0.0
    %384 = vmatprep.subr.mxu0 0.0
    %385 = vmatpush2.msra.mxu0 0.0
    %386 = vmatprep.subr.mxu0 0.0
    %387 = vmatpush2.msra.mxu0 0.0
    %388 = vmatprep.subr.mxu0 0.0
    %389 = vmatpush2.msra.mxu0 0.0
    %390 = vmatprep.subr.mxu0 0.0
    %391 = vmatpush2.msra.mxu0 0.0
    %392 = vmatprep.subr.mxu0 0.0
    %393 = vmatpush2.msra.mxu0 0.0
    %394 = vmatprep.subr.mxu0 0.0
    %395 = vmatpush2.msra.mxu0 0.0
    %396 = vmatprep.subr.mxu0 0.0
    %397 = vmatpush2.msra.mxu0 0.0
    %398 = vmatprep.subr.mxu0 0.0
    %399 = vmatpush2.msra.mxu0 0.0
    %400 = vmatprep.subr.mxu0 0.0
    %401 = vmatpush2.msra.mxu0 0.0
    %402 = vmatprep.subr.mxu0 0.0
    %403 = vmatpush2.msra.mxu0 0.0
    %404 = vmatprep.mubr.f32.mxu0 0.0
    %405 = vmatmul.mubr.f32.gmra.mxu0 %v338
    %v406 = vpop.f32.mrf.mxu0
    %v407 = vadd.f32 %v334, %v406
    %v408 = vpop.f32.mrf.mxu0
    %409 = vdwg.mxu0
    %v410 = vxor.u32 %v407, 2147483648
    %v411 = vmul.f32 %v410, 1.442695
    %v412 = vpow.pop %v411
    %v413 = vadd.f32 %v412, 1.0
    %v414 = vrcp.pop %v413
    %v415 = vmul.f32 1.0, %v414
    %v416 = vtanh.pop %v407
    %v417 = vmul.f32 %v415, 0.0
    %419 = vrot.lane.b32.xlu0 %v416, 64
    %v420 = vpop.permute.xlu0 %419
    %v422 = vmul.f32 %v415, %v420
    %424 = vrot.lane.b32.xlu0 %v422, 32
    %v425 = vpop.permute.xlu0 %424
    %v427 = vadd.f32 %v417, %v425
    %v428 = vtanh.pop %v427
    %430 = vrot.lane.b32.xlu0 %v428, 64
    %v431 = vpop.permute.xlu0 %430
    %v433 = vmul.f32 %v415, %v431
    %s434 = scalar_lea.vmem [#allocation2], 8
    %v435 = vld [vmem:[%s434] sm:$0xff]
    %v436 = vsel %vm226, %v327, 0
    %438 = vmatprep.subr.mxu0 0.0
    %439 = vmatpush1.msra.mxu0 0.0
    %440 = vmatprep.subr.mxu0 0.0
    %441 = vmatpush1.msra.mxu0 0.0
    %442 = vmatprep.subr.mxu0 0.0
    %443 = vmatpush1.msra.mxu0 0.0
    %444 = vmatprep.subr.mxu0 0.0
    %445 = vmatpush1.msra.mxu0 0.0
    %446 = vmatprep.subr.mxu0 0.0
    %447 = vmatpush1.msra.mxu0 0.0
    %448 = vmatprep.subr.mxu0 0.0
    %449 = vmatpush1.msra.mxu0 0.0
    %450 = vmatprep.subr.mxu0 0.0
    %451 = vmatpush1.msra.mxu0 0.0
    %452 = vmatprep.subr.mxu0 0.0
    %453 = vmatpush1.msra.mxu0 0.0
    %454 = vmatprep.subr.mxu0 0.0
    %455 = vmatpush1.msra.mxu0 0.0
    %456 = vmatprep.subr.mxu0 0.0
    %457 = vmatpush1.msra.mxu0 0.0
    %458 = vmatprep.subr.mxu0 0.0
    %459 = vmatpush1.msra.mxu0 0.0
    %460 = vmatprep.subr.mxu0 0.0
    %461 = vmatpush1.msra.mxu0 0.0
    %462 = vmatprep.subr.mxu0 0.0
    %463 = vmatpush1.msra.mxu0 %v215
    %464 = vmatprep.subr.mxu0 0.0
    %465 = vmatpush1.msra.mxu0 %v214
    %466 = vmatprep.subr.mxu0 0.0
    %467 = vmatpush1.msra.mxu0 %v213
    %468 = vmatprep.subr.mxu0 0.0
    %469 = vmatpush1.msra.mxu0 %v212
    %470 = vmatprep.subr.mxu0 0.0
    %471 = vmatpush2.msra.mxu0 0.0
    %472 = vmatprep.subr.mxu0 0.0
    %473 = vmatpush2.msra.mxu0 0.0
    %474 = vmatprep.subr.mxu0 0.0
    %475 = vmatpush2.msra.mxu0 0.0
    %476 = vmatprep.subr.mxu0 0.0
    %477 = vmatpush2.msra.mxu0 0.0
    %478 = vmatprep.subr.mxu0 0.0
    %479 = vmatpush2.msra.mxu0 0.0
    %480 = vmatprep.subr.mxu0 0.0
    %481 = vmatpush2.msra.mxu0 0.0
    %482 = vmatprep.subr.mxu0 0.0
    %483 = vmatpush2.msra.mxu0 0.0
    %484 = vmatprep.subr.mxu0 0.0
    %485 = vmatpush2.msra.mxu0 0.0
    %486 = vmatprep.subr.mxu0 0.0
    %487 = vmatpush2.msra.mxu0 0.0
    %488 = vmatprep.subr.mxu0 0.0
    %489 = vmatpush2.msra.mxu0 0.0
    %490 = vmatprep.subr.mxu0 0.0
    %491 = vmatpush2.msra.mxu0 0.0
    %492 = vmatprep.subr.mxu0 0.0
    %493 = vmatpush2.msra.mxu0 0.0
    %494 = vmatprep.subr.mxu0 0.0
    %495 = vmatpush2.msra.mxu0 0.0
    %496 = vmatprep.subr.mxu0 0.0
    %497 = vmatpush2.msra.mxu0 0.0
    %498 = vmatprep.subr.mxu0 0.0
    %499 = vmatpush2.msra.mxu0 0.0
    %500 = vmatprep.subr.mxu0 0.0
    %501 = vmatpush2.msra.mxu0 0.0
    %502 = vmatprep.mubr.f32.mxu0 0.0
    %503 = vmatmul.mubr.f32.gmra.mxu0 %v436
    %v504 = vpop.f32.mrf.mxu0
    %v505 = vadd.f32 0.0, %v504
    %v506 = vpop.f32.mrf.mxu0
    %507 = vdwg.mxu0
    %v508 = vadd.f32 %v435, %v505
    %v509 = vxor.u32 %v508, 2147483648
    %v510 = vmul.f32 %v509, 1.442695
    %v511 = vpow.pop %v510
    %v512 = vadd.f32 %v511, 1.0
    %v513 = vrcp.pop %v512
    %v514 = vmul.f32 1.0, %v513
    %v515 = vtanh.pop %v508
    %v516 = vmul.f32 %v514, %v318
    %518 = vrot.lane.b32.xlu0 %v515, 64
    %v519 = vpop.permute.xlu0 %518
    %v521 = vmul.f32 %v514, %v519
    %523 = vrot.lane.b32.xlu0 %v521, 32
    %v524 = vpop.permute.xlu0 %523
    %v526 = vadd.f32 %v516, %v524
    %v527 = vtanh.pop %v526
    %529 = vrot.lane.b32.xlu0 %v527, 64
    %v530 = vpop.permute.xlu0 %529
    %v532 = vmul.f32 %v514, %v530
    %534 = vrot.lane.b32.xlu0 %v532, 32
    %v535 = vpop.permute.xlu0 %534
    %538 = vrot.lane.b32.xlu0 %v433, 64
    %v539 = vpop.permute.xlu0 %538
    %v541 = vsel %vm226, %v535, %v539
    %v543 = vsel %vm336, %v541, 0
    %545 = vmatprep.subr.mxu0 0.0
    %546 = vmatpush1.msra.mxu0 0.0
    %547 = vmatprep.subr.mxu0 0.0
    %548 = vmatpush1.msra.mxu0 0.0
    %549 = vmatprep.subr.mxu0 0.0
    %550 = vmatpush1.msra.mxu0 0.0
    %551 = vmatprep.subr.mxu0 0.0
    %552 = vmatpush1.msra.mxu0 0.0
    %553 = vmatprep.subr.mxu0 0.0
    %554 = vmatpush1.msra.mxu0 0.0
    %555 = vmatprep.subr.mxu0 0.0
    %556 = vmatpush1.msra.mxu0 0.0
    %557 = vmatprep.subr.mxu0 0.0
    %558 = vmatpush1.msra.mxu0 0.0
    %559 = vmatprep.subr.mxu0 0.0
    %560 = vmatpush1.msra.mxu0 0.0
    %561 = vmatprep.subr.mxu0 0.0
    %562 = vmatpush1.msra.mxu0 %v223
    %563 = vmatprep.subr.mxu0 0.0
    %564 = vmatpush1.msra.mxu0 %v222
    %565 = vmatprep.subr.mxu0 0.0
    %566 = vmatpush1.msra.mxu0 %v221
    %567 = vmatprep.subr.mxu0 0.0
    %568 = vmatpush1.msra.mxu0 %v220
    %569 = vmatprep.subr.mxu0 0.0
    %570 = vmatpush1.msra.mxu0 %v219
    %571 = vmatprep.subr.mxu0 0.0
    %572 = vmatpush1.msra.mxu0 %v218
    %573 = vmatprep.subr.mxu0 0.0
    %574 = vmatpush1.msra.mxu0 %v217
    %575 = vmatprep.subr.mxu0 0.0
    %576 = vmatpush1.msra.mxu0 %v216
    %577 = vmatprep.subr.mxu0 0.0
    %578 = vmatpush2.msra.mxu0 0.0
    %579 = vmatprep.subr.mxu0 0.0
    %580 = vmatpush2.msra.mxu0 0.0
    %581 = vmatprep.subr.mxu0 0.0
    %582 = vmatpush2.msra.mxu0 0.0
    %583 = vmatprep.subr.mxu0 0.0
    %584 = vmatpush2.msra.mxu0 0.0
    %585 = vmatprep.subr.mxu0 0.0
    %586 = vmatpush2.msra.mxu0 0.0
    %587 = vmatprep.subr.mxu0 0.0
    %588 = vmatpush2.msra.mxu0 0.0
    %589 = vmatprep.subr.mxu0 0.0
    %590 = vmatpush2.msra.mxu0 0.0
    %591 = vmatprep.subr.mxu0 0.0
    %592 = vmatpush2.msra.mxu0 0.0
    %593 = vmatprep.subr.mxu0 0.0
    %594 = vmatpush2.msra.mxu0 0.0
    %595 = vmatprep.subr.mxu0 0.0
    %596 = vmatpush2.msra.mxu0 0.0
    %597 = vmatprep.subr.mxu0 0.0
    %598 = vmatpush2.msra.mxu0 0.0
    %599 = vmatprep.subr.mxu0 0.0
    %600 = vmatpush2.msra.mxu0 0.0
    %601 = vmatprep.subr.mxu0 0.0
    %602 = vmatpush2.msra.mxu0 0.0
    %603 = vmatprep.subr.mxu0 0.0
    %604 = vmatpush2.msra.mxu0 0.0
    %605 = vmatprep.subr.mxu0 0.0
    %606 = vmatpush2.msra.mxu0 0.0
    %607 = vmatprep.subr.mxu0 0.0
    %608 = vmatpush2.msra.mxu0 0.0
    %609 = vmatprep.mubr.f32.mxu0 0.0
    %610 = vmatmul.mubr.f32.gmra.mxu0 %v543
    %v611 = vpop.f32.mrf.mxu0
    %v612 = vadd.f32 %v334, %v611
    %v613 = vpop.f32.mrf.mxu0
    %614 = vdwg.mxu0
    %v615 = vxor.u32 %v612, 2147483648
    %v616 = vmul.f32 %v615, 1.442695
    %v617 = vpow.pop %v616
    %v618 = vadd.f32 %v617, 1.0
    %v619 = vrcp.pop %v618
    %v620 = vmul.f32 1.0, %v619
    %v621 = vtanh.pop %v612
    %v622 = vmul.f32 %v620, %v427
    %624 = vrot.lane.b32.xlu0 %v621, 64
    %v625 = vpop.permute.xlu0 %624
    %v627 = vmul.f32 %v620, %v625
    %629 = vrot.lane.b32.xlu0 %v627, 32
    %v630 = vpop.permute.xlu0 %629
    %v632 = vadd.f32 %v622, %v630
    %v633 = vtanh.pop %v632
    %635 = vrot.lane.b32.xlu0 %v633, 64
    %v636 = vpop.permute.xlu0 %635
    %v638 = vmul.f32 %v620, %v636
    %s639 = scalar_lea.vmem [#allocation2], 16
    %v640 = vld [vmem:[%s639] sm:$0xff]
    %v641 = vsel %vm226, %v535, 0
    %643 = vmatprep.subr.mxu0 0.0
    %644 = vmatpush1.msra.mxu0 0.0
    %645 = vmatprep.subr.mxu0 0.0
    %646 = vmatpush1.msra.mxu0 0.0
    %647 = vmatprep.subr.mxu0 0.0
    %648 = vmatpush1.msra.mxu0 0.0
    %649 = vmatprep.subr.mxu0 0.0
    %650 = vmatpush1.msra.mxu0 0.0
    %651 = vmatprep.subr.mxu0 0.0
    %652 = vmatpush1.msra.mxu0 0.0
    %653 = vmatprep.subr.mxu0 0.0
    %654 = vmatpush1.msra.mxu0 0.0
    %655 = vmatprep.subr.mxu0 0.0
    %656 = vmatpush1.msra.mxu0 0.0
    %657 = vmatprep.subr.mxu0 0.0
    %658 = vmatpush1.msra.mxu0 0.0
    %659 = vmatprep.subr.mxu0 0.0
    %660 = vmatpush1.msra.mxu0 0.0
    %661 = vmatprep.subr.mxu0 0.0
    %662 = vmatpush1.msra.mxu0 0.0
    %663 = vmatprep.subr.mxu0 0.0
    %664 = vmatpush1.msra.mxu0 0.0
    %665 = vmatprep.subr.mxu0 0.0
    %666 = vmatpush1.msra.mxu0 0.0
    %667 = vmatprep.subr.mxu0 0.0
    %668 = vmatpush1.msra.mxu0 %v215
    %669 = vmatprep.subr.mxu0 0.0
    %670 = vmatpush1.msra.mxu0 %v214
    %671 = vmatprep.subr.mxu0 0.0
    %672 = vmatpush1.msra.mxu0 %v213
    %673 = vmatprep.subr.mxu0 0.0
    %674 = vmatpush1.msra.mxu0 %v212
    %675 = vmatprep.subr.mxu0 0.0
    %676 = vmatpush2.msra.mxu0 0.0
    %677 = vmatprep.subr.mxu0 0.0
    %678 = vmatpush2.msra.mxu0 0.0
    %679 = vmatprep.subr.mxu0 0.0
    %680 = vmatpush2.msra.mxu0 0.0
    %681 = vmatprep.subr.mxu0 0.0
    %682 = vmatpush2.msra.mxu0 0.0
    %683 = vmatprep.subr.mxu0 0.0
    %684 = vmatpush2.msra.mxu0 0.0
    %685 = vmatprep.subr.mxu0 0.0
    %686 = vmatpush2.msra.mxu0 0.0
    %687 = vmatprep.subr.mxu0 0.0
    %688 = vmatpush2.msra.mxu0 0.0
    %689 = vmatprep.subr.mxu0 0.0
    %690 = vmatpush2.msra.mxu0 0.0
    %691 = vmatprep.subr.mxu0 0.0
    %692 = vmatpush2.msra.mxu0 0.0
    %693 = vmatprep.subr.mxu0 0.0
    %694 = vmatpush2.msra.mxu0 0.0
    %695 = vmatprep.subr.mxu0 0.0
    %696 = vmatpush2.msra.mxu0 0.0
    %697 = vmatprep.subr.mxu0 0.0
    %698 = vmatpush2.msra.mxu0 0.0
    %699 = vmatprep.subr.mxu0 0.0
    %700 = vmatpush2.msra.mxu0 0.0
    %701 = vmatprep.subr.mxu0 0.0
    %702 = vmatpush2.msra.mxu0 0.0
    %703 = vmatprep.subr.mxu0 0.0
    %704 = vmatpush2.msra.mxu0 0.0
    %705 = vmatprep.subr.mxu0 0.0
    %706 = vmatpush2.msra.mxu0 0.0
    %707 = vmatprep.mubr.f32.mxu0 0.0
    %708 = vmatmul.mubr.f32.gmra.mxu0 %v641
    %v709 = vpop.f32.mrf.mxu0
    %v710 = vadd.f32 0.0, %v709
    %v711 = vpop.f32.mrf.mxu0
    %712 = vdwg.mxu0
    %v713 = vadd.f32 %v640, %v710
    %v714 = vxor.u32 %v713, 2147483648
    %v715 = vmul.f32 %v714, 1.442695
    %v716 = vpow.pop %v715
    %v717 = vadd.f32 %v716, 1.0
    %v718 = vrcp.pop %v717
    %v719 = vmul.f32 1.0, %v718
    %v720 = vtanh.pop %v713
    %v721 = vmul.f32 %v719, %v526
    %723 = vrot.lane.b32.xlu0 %v720, 64
    %v724 = vpop.permute.xlu0 %723
    %v726 = vmul.f32 %v719, %v724
    %728 = vrot.lane.b32.xlu0 %v726, 32
    %v729 = vpop.permute.xlu0 %728
    %v731 = vadd.f32 %v721, %v729
    %v732 = vtanh.pop %v731
    %734 = vrot.lane.b32.xlu0 %v732, 64
    %v735 = vpop.permute.xlu0 %734
    %v737 = vmul.f32 %v719, %v735
    %739 = vrot.lane.b32.xlu0 %v737, 32
    %v740 = vpop.permute.xlu0 %739
    %743 = vrot.lane.b32.xlu0 %v638, 64
    %v744 = vpop.permute.xlu0 %743
    %v746 = vsel %vm226, %v740, %v744
    %v748 = vsel %vm336, %v746, 0
    %750 = vmatprep.subr.mxu0 0.0
    %751 = vmatpush1.msra.mxu0 0.0
    %752 = vmatprep.subr.mxu0 0.0
    %753 = vmatpush1.msra.mxu0 0.0
    %754 = vmatprep.subr.mxu0 0.0
    %755 = vmatpush1.msra.mxu0 0.0
    %756 = vmatprep.subr.mxu0 0.0
    %757 = vmatpush1.msra.mxu0 0.0
    %758 = vmatprep.subr.mxu0 0.0
    %759 = vmatpush1.msra.mxu0 0.0
    %760 = vmatprep.subr.mxu0 0.0
    %761 = vmatpush1.msra.mxu0 0.0
    %762 = vmatprep.subr.mxu0 0.0
    %763 = vmatpush1.msra.mxu0 0.0
    %764 = vmatprep.subr.mxu0 0.0
    %765 = vmatpush1.msra.mxu0 0.0
    %766 = vmatprep.subr.mxu0 0.0
    %767 = vmatpush1.msra.mxu0 %v223
    %768 = vmatprep.subr.mxu0 0.0
    %769 = vmatpush1.msra.mxu0 %v222
    %770 = vmatprep.subr.mxu0 0.0
    %771 = vmatpush1.msra.mxu0 %v221
    %772 = vmatprep.subr.mxu0 0.0
    %773 = vmatpush1.msra.mxu0 %v220
    %774 = vmatprep.subr.mxu0 0.0
    %775 = vmatpush1.msra.mxu0 %v219
    %776 = vmatprep.subr.mxu0 0.0
    %777 = vmatpush1.msra.mxu0 %v218
    %778 = vmatprep.subr.mxu0 0.0
    %779 = vmatpush1.msra.mxu0 %v217
    %780 = vmatprep.subr.mxu0 0.0
    %781 = vmatpush1.msra.mxu0 %v216
    %782 = vmatprep.subr.mxu0 0.0
    %783 = vmatpush2.msra.mxu0 0.0
    %784 = vmatprep.subr.mxu0 0.0
    %785 = vmatpush2.msra.mxu0 0.0
    %786 = vmatprep.subr.mxu0 0.0
    %787 = vmatpush2.msra.mxu0 0.0
    %788 = vmatprep.subr.mxu0 0.0
    %789 = vmatpush2.msra.mxu0 0.0
    %790 = vmatprep.subr.mxu0 0.0
    %791 = vmatpush2.msra.mxu0 0.0
    %792 = vmatprep.subr.mxu0 0.0
    %793 = vmatpush2.msra.mxu0 0.0
    %794 = vmatprep.subr.mxu0 0.0
    %795 = vmatpush2.msra.mxu0 0.0
    %796 = vmatprep.subr.mxu0 0.0
    %797 = vmatpush2.msra.mxu0 0.0
    %798 = vmatprep.subr.mxu0 0.0
    %799 = vmatpush2.msra.mxu0 0.0
    %800 = vmatprep.subr.mxu0 0.0
    %801 = vmatpush2.msra.mxu0 0.0
    %802 = vmatprep.subr.mxu0 0.0
    %803 = vmatpush2.msra.mxu0 0.0
    %804 = vmatprep.subr.mxu0 0.0
    %805 = vmatpush2.msra.mxu0 0.0
    %806 = vmatprep.subr.mxu0 0.0
    %807 = vmatpush2.msra.mxu0 0.0
    %808 = vmatprep.subr.mxu0 0.0
    %809 = vmatpush2.msra.mxu0 0.0
    %810 = vmatprep.subr.mxu0 0.0
    %811 = vmatpush2.msra.mxu0 0.0
    %812 = vmatprep.subr.mxu0 0.0
    %813 = vmatpush2.msra.mxu0 0.0
    %814 = vmatprep.mubr.f32.mxu0 0.0
    %815 = vmatmul.mubr.f32.gmra.mxu0 %v748
    %v816 = vpop.f32.mrf.mxu0
    %v817 = vadd.f32 %v334, %v816
    %v818 = vpop.f32.mrf.mxu0
    %819 = vdwg.mxu0
    %v820 = vxor.u32 %v817, 2147483648
    %v821 = vmul.f32 %v820, 1.442695
    %v822 = vpow.pop %v821
    %v823 = vadd.f32 %v822, 1.0
    %v824 = vrcp.pop %v823
    %v825 = vmul.f32 1.0, %v824
    %v826 = vtanh.pop %v817
    %v827 = vmul.f32 %v825, %v632
    %829 = vrot.lane.b32.xlu0 %v826, 64
    %v830 = vpop.permute.xlu0 %829
    %v832 = vmul.f32 %v825, %v830
    %834 = vrot.lane.b32.xlu0 %v832, 32
    %v835 = vpop.permute.xlu0 %834
    %v837 = vadd.f32 %v827, %v835
    %v838 = vtanh.pop %v837
    %840 = vrot.lane.b32.xlu0 %v838, 64
    %v841 = vpop.permute.xlu0 %840
    %v843 = vmul.f32 %v825, %v841
    %s844 = scalar_lea.vmem [#allocation2], 24
    %v845 = vld [vmem:[%s844] sm:$0xff]
    %v846 = vsel %vm226, %v740, 0
    %848 = vmatprep.subr.mxu0 0.0
    %849 = vmatpush1.msra.mxu0 0.0
    %850 = vmatprep.subr.mxu0 0.0
    %851 = vmatpush1.msra.mxu0 0.0
    %852 = vmatprep.subr.mxu0 0.0
    %853 = vmatpush1.msra.mxu0 0.0
    %854 = vmatprep.subr.mxu0 0.0
    %855 = vmatpush1.msra.mxu0 0.0
    %856 = vmatprep.subr.mxu0 0.0
    %857 = vmatpush1.msra.mxu0 0.0
    %858 = vmatprep.subr.mxu0 0.0
    %859 = vmatpush1.msra.mxu0 0.0
    %860 = vmatprep.subr.mxu0 0.0
    %861 = vmatpush1.msra.mxu0 0.0
    %862 = vmatprep.subr.mxu0 0.0
    %863 = vmatpush1.msra.mxu0 0.0
    %864 = vmatprep.subr.mxu0 0.0
    %865 = vmatpush1.msra.mxu0 0.0
    %866 = vmatprep.subr.mxu0 0.0
    %867 = vmatpush1.msra.mxu0 0.0
    %868 = vmatprep.subr.mxu0 0.0
    %869 = vmatpush1.msra.mxu0 0.0
    %870 = vmatprep.subr.mxu0 0.0
    %871 = vmatpush1.msra.mxu0 0.0
    %872 = vmatprep.subr.mxu0 0.0
    %873 = vmatpush1.msra.mxu0 %v215
    %874 = vmatprep.subr.mxu0 0.0
    %875 = vmatpush1.msra.mxu0 %v214
    %876 = vmatprep.subr.mxu0 0.0
    %877 = vmatpush1.msra.mxu0 %v213
    %878 = vmatprep.subr.mxu0 0.0
    %879 = vmatpush1.msra.mxu0 %v212
    %880 = vmatprep.subr.mxu0 0.0
    %881 = vmatpush2.msra.mxu0 0.0
    %882 = vmatprep.subr.mxu0 0.0
    %883 = vmatpush2.msra.mxu0 0.0
    %884 = vmatprep.subr.mxu0 0.0
    %885 = vmatpush2.msra.mxu0 0.0
    %886 = vmatprep.subr.mxu0 0.0
    %887 = vmatpush2.msra.mxu0 0.0
    %888 = vmatprep.subr.mxu0 0.0
    %889 = vmatpush2.msra.mxu0 0.0
    %890 = vmatprep.subr.mxu0 0.0
    %891 = vmatpush2.msra.mxu0 0.0
    %892 = vmatprep.subr.mxu0 0.0
    %893 = vmatpush2.msra.mxu0 0.0
    %894 = vmatprep.subr.mxu0 0.0
    %895 = vmatpush2.msra.mxu0 0.0
    %896 = vmatprep.subr.mxu0 0.0
    %897 = vmatpush2.msra.mxu0 0.0
    %898 = vmatprep.subr.mxu0 0.0
    %899 = vmatpush2.msra.mxu0 0.0
    %900 = vmatprep.subr.mxu0 0.0
    %901 = vmatpush2.msra.mxu0 0.0
    %902 = vmatprep.subr.mxu0 0.0
    %903 = vmatpush2.msra.mxu0 0.0
    %904 = vmatprep.subr.mxu0 0.0
    %905 = vmatpush2.msra.mxu0 0.0
    %906 = vmatprep.subr.mxu0 0.0
    %907 = vmatpush2.msra.mxu0 0.0
    %908 = vmatprep.subr.mxu0 0.0
    %909 = vmatpush2.msra.mxu0 0.0
    %910 = vmatprep.subr.mxu0 0.0
    %911 = vmatpush2.msra.mxu0 0.0
    %912 = vmatprep.mubr.f32.mxu0 0.0
    %913 = vmatmul.mubr.f32.gmra.mxu0 %v846
    %v914 = vpop.f32.mrf.mxu0
    %v915 = vadd.f32 0.0, %v914
    %v916 = vpop.f32.mrf.mxu0
    %917 = vdwg.mxu0
    %v918 = vadd.f32 %v845, %v915
    %v919 = vxor.u32 %v918, 2147483648
    %v920 = vmul.f32 %v919, 1.442695
    %v921 = vpow.pop %v920
    %v922 = vadd.f32 %v921, 1.0
    %v923 = vrcp.pop %v922
    %v924 = vmul.f32 1.0, %v923
    %v925 = vtanh.pop %v918
    %v926 = vmul.f32 %v924, %v731
    %928 = vrot.lane.b32.xlu0 %v925, 64
    %v929 = vpop.permute.xlu0 %928
    %v931 = vmul.f32 %v924, %v929
    %933 = vrot.lane.b32.xlu0 %v931, 32
    %v934 = vpop.permute.xlu0 %933
    %v936 = vadd.f32 %v926, %v934
    %v937 = vtanh.pop %v936
    %939 = vrot.lane.b32.xlu0 %v937, 64
    %v940 = vpop.permute.xlu0 %939
    %v942 = vmul.f32 %v924, %v940
    %944 = vrot.lane.b32.xlu0 %v942, 32
    %v945 = vpop.permute.xlu0 %944
    %948 = vrot.lane.b32.xlu0 %v843, 64
    %v949 = vpop.permute.xlu0 %948
    %v951 = vsel %vm226, %v945, %v949
    %v953 = vsel %vm336, %v951, 0
    %955 = vmatprep.subr.mxu0 0.0
    %956 = vmatpush1.msra.mxu0 0.0
    %957 = vmatprep.subr.mxu0 0.0
    %958 = vmatpush1.msra.mxu0 0.0
    %959 = vmatprep.subr.mxu0 0.0
    %960 = vmatpush1.msra.mxu0 0.0
    %961 = vmatprep.subr.mxu0 0.0
    %962 = vmatpush1.msra.mxu0 0.0
    %963 = vmatprep.subr.mxu0 0.0
    %964 = vmatpush1.msra.mxu0 0.0
    %965 = vmatprep.subr.mxu0 0.0
    %966 = vmatpush1.msra.mxu0 0.0
    %967 = vmatprep.subr.mxu0 0.0
    %968 = vmatpush1.msra.mxu0 0.0
    %969 = vmatprep.subr.mxu0 0.0
    %970 = vmatpush1.msra.mxu0 0.0
    %971 = vmatprep.subr.mxu0 0.0
    %972 = vmatpush1.msra.mxu0 %v223
    %973 = vmatprep.subr.mxu0 0.0
    %974 = vmatpush1.msra.mxu0 %v222
    %975 = vmatprep.subr.mxu0 0.0
    %976 = vmatpush1.msra.mxu0 %v221
    %977 = vmatprep.subr.mxu0 0.0
    %978 = vmatpush1.msra.mxu0 %v220
    %979 = vmatprep.subr.mxu0 0.0
    %980 = vmatpush1.msra.mxu0 %v219
    %981 = vmatprep.subr.mxu0 0.0
    %982 = vmatpush1.msra.mxu0 %v218
    %983 = vmatprep.subr.mxu0 0.0
    %984 = vmatpush1.msra.mxu0 %v217
    %985 = vmatprep.subr.mxu0 0.0
    %986 = vmatpush1.msra.mxu0 %v216
    %987 = vmatprep.subr.mxu0 0.0
    %988 = vmatpush2.msra.mxu0 0.0
    %989 = vmatprep.subr.mxu0 0.0
    %990 = vmatpush2.msra.mxu0 0.0
    %991 = vmatprep.subr.mxu0 0.0
    %992 = vmatpush2.msra.mxu0 0.0
    %993 = vmatprep.subr.mxu0 0.0
    %994 = vmatpush2.msra.mxu0 0.0
    %995 = vmatprep.subr.mxu0 0.0
    %996 = vmatpush2.msra.mxu0 0.0
    %997 = vmatprep.subr.mxu0 0.0
    %998 = vmatpush2.msra.mxu0 0.0
    %999 = vmatprep.subr.mxu0 0.0
    %1000 = vmatpush2.msra.mxu0 0.0
    %1001 = vmatprep.subr.mxu0 0.0
    %1002 = vmatpush2.msra.mxu0 0.0
    %1003 = vmatprep.subr.mxu0 0.0
    %1004 = vmatpush2.msra.mxu0 0.0
    %1005 = vmatprep.subr.mxu0 0.0
    %1006 = vmatpush2.msra.mxu0 0.0
    %1007 = vmatprep.subr.mxu0 0.0
    %1008 = vmatpush2.msra.mxu0 0.0
    %1009 = vmatprep.subr.mxu0 0.0
    %1010 = vmatpush2.msra.mxu0 0.0
    %1011 = vmatprep.subr.mxu0 0.0
    %1012 = vmatpush2.msra.mxu0 0.0
    %1013 = vmatprep.subr.mxu0 0.0
    %1014 = vmatpush2.msra.mxu0 0.0
    %1015 = vmatprep.subr.mxu0 0.0
    %1016 = vmatpush2.msra.mxu0 0.0
    %1017 = vmatprep.subr.mxu0 0.0
    %1018 = vmatpush2.msra.mxu0 0.0
    %1019 = vmatprep.mubr.f32.mxu0 0.0
    %1020 = vmatmul.mubr.f32.gmra.mxu0 %v953
    %v1021 = vpop.f32.mrf.mxu0
    %v1022 = vadd.f32 %v334, %v1021
    %v1023 = vpop.f32.mrf.mxu0
    %1024 = vdwg.mxu0
    %v1025 = vxor.u32 %v1022, 2147483648
    %v1026 = vmul.f32 %v1025, 1.442695
    %v1027 = vpow.pop %v1026
    %v1028 = vadd.f32 %v1027, 1.0
    %v1029 = vrcp.pop %v1028
    %v1030 = vmul.f32 1.0, %v1029
    %v1031 = vtanh.pop %v1022
    %v1032 = vmul.f32 %v1030, %v837
    %1034 = vrot.lane.b32.xlu0 %v1031, 64
    %v1035 = vpop.permute.xlu0 %1034
    %v1037 = vmul.f32 %v1030, %v1035
    %1039 = vrot.lane.b32.xlu0 %v1037, 32
    %v1040 = vpop.permute.xlu0 %1039
    %v1042 = vadd.f32 %v1032, %v1040
    %v1043 = vtanh.pop %v1042
    %1045 = vrot.lane.b32.xlu0 %v1043, 64
    %v1046 = vpop.permute.xlu0 %1045
    %v1048 = vmul.f32 %v1030, %v1046
    %s1049 = scalar_lea.vmem [#allocation2], 32
    %v1050 = vld [vmem:[%s1049] sm:$0xff]
    %v1051 = vsel %vm226, %v945, 0
    %1053 = vmatprep.subr.mxu0 0.0
    %1054 = vmatpush1.msra.mxu0 0.0
    %1055 = vmatprep.subr.mxu0 0.0
    %1056 = vmatpush1.msra.mxu0 0.0
    %1057 = vmatprep.subr.mxu0 0.0
    %1058 = vmatpush1.msra.mxu0 0.0
    %1059 = vmatprep.subr.mxu0 0.0
    %1060 = vmatpush1.msra.mxu0 0.0
    %1061 = vmatprep.subr.mxu0 0.0
    %1062 = vmatpush1.msra.mxu0 0.0
    %1063 = vmatprep.subr.mxu0 0.0
    %1064 = vmatpush1.msra.mxu0 0.0
    %1065 = vmatprep.subr.mxu0 0.0
    %1066 = vmatpush1.msra.mxu0 0.0
    %1067 = vmatprep.subr.mxu0 0.0
    %1068 = vmatpush1.msra.mxu0 0.0
    %1069 = vmatprep.subr.mxu0 0.0
    %1070 = vmatpush1.msra.mxu0 0.0
    %1071 = vmatprep.subr.mxu0 0.0
    %1072 = vmatpush1.msra.mxu0 0.0
    %1073 = vmatprep.subr.mxu0 0.0
    %1074 = vmatpush1.msra.mxu0 0.0
    %1075 = vmatprep.subr.mxu0 0.0
    %1076 = vmatpush1.msra.mxu0 0.0
    %1077 = vmatprep.subr.mxu0 0.0
    %1078 = vmatpush1.msra.mxu0 %v215
    %1079 = vmatprep.subr.mxu0 0.0
    %1080 = vmatpush1.msra.mxu0 %v214
    %1081 = vmatprep.subr.mxu0 0.0
    %1082 = vmatpush1.msra.mxu0 %v213
    %1083 = vmatprep.subr.mxu0 0.0
    %1084 = vmatpush1.msra.mxu0 %v212
    %1085 = vmatprep.subr.mxu0 0.0
    %1086 = vmatpush2.msra.mxu0 0.0
    %1087 = vmatprep.subr.mxu0 0.0
    %1088 = vmatpush2.msra.mxu0 0.0
    %1089 = vmatprep.subr.mxu0 0.0
    %1090 = vmatpush2.msra.mxu0 0.0
    %1091 = vmatprep.subr.mxu0 0.0
    %1092 = vmatpush2.msra.mxu0 0.0
    %1093 = vmatprep.subr.mxu0 0.0
    %1094 = vmatpush2.msra.mxu0 0.0
    %1095 = vmatprep.subr.mxu0 0.0
    %1096 = vmatpush2.msra.mxu0 0.0
    %1097 = vmatprep.subr.mxu0 0.0
    %1098 = vmatpush2.msra.mxu0 0.0
    %1099 = vmatprep.subr.mxu0 0.0
    %1100 = vmatpush2.msra.mxu0 0.0
    %1101 = vmatprep.subr.mxu0 0.0
    %1102 = vmatpush2.msra.mxu0 0.0
    %1103 = vmatprep.subr.mxu0 0.0
    %1104 = vmatpush2.msra.mxu0 0.0
    %1105 = vmatprep.subr.mxu0 0.0
    %1106 = vmatpush2.msra.mxu0 0.0
    %1107 = vmatprep.subr.mxu0 0.0
    %1108 = vmatpush2.msra.mxu0 0.0
    %1109 = vmatprep.subr.mxu0 0.0
    %1110 = vmatpush2.msra.mxu0 0.0
    %1111 = vmatprep.subr.mxu0 0.0
    %1112 = vmatpush2.msra.mxu0 0.0
    %1113 = vmatprep.subr.mxu0 0.0
    %1114 = vmatpush2.msra.mxu0 0.0
    %1115 = vmatprep.subr.mxu0 0.0
    %1116 = vmatpush2.msra.mxu0 0.0
    %1117 = vmatprep.mubr.f32.mxu0 0.0
    %1118 = vmatmul.mubr.f32.gmra.mxu0 %v1051
    %v1119 = vpop.f32.mrf.mxu0
    %v1120 = vadd.f32 0.0, %v1119
    %v1121 = vpop.f32.mrf.mxu0
    %1122 = vdwg.mxu0
    %v1123 = vadd.f32 %v1050, %v1120
    %v1124 = vxor.u32 %v1123, 2147483648
    %v1125 = vmul.f32 %v1124, 1.442695
    %v1126 = vpow.pop %v1125
    %v1127 = vadd.f32 %v1126, 1.0
    %v1128 = vrcp.pop %v1127
    %v1129 = vmul.f32 1.0, %v1128
    %v1130 = vtanh.pop %v1123
    %v1131 = vmul.f32 %v1129, %v936
    %1133 = vrot.lane.b32.xlu0 %v1130, 64
    %v1134 = vpop.permute.xlu0 %1133
    %v1136 = vmul.f32 %v1129, %v1134
    %1138 = vrot.lane.b32.xlu0 %v1136, 32
    %v1139 = vpop.permute.xlu0 %1138
    %v1141 = vadd.f32 %v1131, %v1139
    %v1142 = vtanh.pop %v1141
    %1144 = vrot.lane.b32.xlu0 %v1142, 64
    %v1145 = vpop.permute.xlu0 %1144
    %v1147 = vmul.f32 %v1129, %v1145
    %1149 = vrot.lane.b32.xlu0 %v1147, 32
    %v1150 = vpop.permute.xlu0 %1149
    %1153 = vrot.lane.b32.xlu0 %v1048, 64
    %v1154 = vpop.permute.xlu0 %1153
    %v1156 = vsel %vm226, %v1150, %v1154
    %v1158 = vsel %vm336, %v1156, 0
    %1160 = vmatprep.subr.mxu0 0.0
    %1161 = vmatpush1.msra.mxu0 0.0
    %1162 = vmatprep.subr.mxu0 0.0
    %1163 = vmatpush1.msra.mxu0 0.0
    %1164 = vmatprep.subr.mxu0 0.0
    %1165 = vmatpush1.msra.mxu0 0.0
    %1166 = vmatprep.subr.mxu0 0.0
    %1167 = vmatpush1.msra.mxu0 0.0
    %1168 = vmatprep.subr.mxu0 0.0
    %1169 = vmatpush1.msra.mxu0 0.0
    %1170 = vmatprep.subr.mxu0 0.0
    %1171 = vmatpush1.msra.mxu0 0.0
    %1172 = vmatprep.subr.mxu0 0.0
    %1173 = vmatpush1.msra.mxu0 0.0
    %1174 = vmatprep.subr.mxu0 0.0
    %1175 = vmatpush1.msra.mxu0 0.0
    %1176 = vmatprep.subr.mxu0 0.0
    %1177 = vmatpush1.msra.mxu0 %v223
    %1178 = vmatprep.subr.mxu0 0.0
    %1179 = vmatpush1.msra.mxu0 %v222
    %1180 = vmatprep.subr.mxu0 0.0
    %1181 = vmatpush1.msra.mxu0 %v221
    %1182 = vmatprep.subr.mxu0 0.0
    %1183 = vmatpush1.msra.mxu0 %v220
    %1184 = vmatprep.subr.mxu0 0.0
    %1185 = vmatpush1.msra.mxu0 %v219
    %1186 = vmatprep.subr.mxu0 0.0
    %1187 = vmatpush1.msra.mxu0 %v218
    %1188 = vmatprep.subr.mxu0 0.0
    %1189 = vmatpush1.msra.mxu0 %v217
    %1190 = vmatprep.subr.mxu0 0.0
    %1191 = vmatpush1.msra.mxu0 %v216
    %1192 = vmatprep.subr.mxu0 0.0
    %1193 = vmatpush2.msra.mxu0 0.0
    %1194 = vmatprep.subr.mxu0 0.0
    %1195 = vmatpush2.msra.mxu0 0.0
    %1196 = vmatprep.subr.mxu0 0.0
    %1197 = vmatpush2.msra.mxu0 0.0
    %1198 = vmatprep.subr.mxu0 0.0
    %1199 = vmatpush2.msra.mxu0 0.0
    %1200 = vmatprep.subr.mxu0 0.0
    %1201 = vmatpush2.msra.mxu0 0.0
    %1202 = vmatprep.subr.mxu0 0.0
    %1203 = vmatpush2.msra.mxu0 0.0
    %1204 = vmatprep.subr.mxu0 0.0
    %1205 = vmatpush2.msra.mxu0 0.0
    %1206 = vmatprep.subr.mxu0 0.0
    %1207 = vmatpush2.msra.mxu0 0.0
    %1208 = vmatprep.subr.mxu0 0.0
    %1209 = vmatpush2.msra.mxu0 0.0
    %1210 = vmatprep.subr.mxu0 0.0
    %1211 = vmatpush2.msra.mxu0 0.0
    %1212 = vmatprep.subr.mxu0 0.0
    %1213 = vmatpush2.msra.mxu0 0.0
    %1214 = vmatprep.subr.mxu0 0.0
    %1215 = vmatpush2.msra.mxu0 0.0
    %1216 = vmatprep.subr.mxu0 0.0
    %1217 = vmatpush2.msra.mxu0 0.0
    %1218 = vmatprep.subr.mxu0 0.0
    %1219 = vmatpush2.msra.mxu0 0.0
    %1220 = vmatprep.subr.mxu0 0.0
    %1221 = vmatpush2.msra.mxu0 0.0
    %1222 = vmatprep.subr.mxu0 0.0
    %1223 = vmatpush2.msra.mxu0 0.0
    %1224 = vmatprep.mubr.f32.mxu0 0.0
    %1225 = vmatmul.mubr.f32.gmra.mxu0 %v1158
    %v1226 = vpop.f32.mrf.mxu0
    %v1227 = vadd.f32 %v334, %v1226
    %v1228 = vpop.f32.mrf.mxu0
    %1229 = vdwg.mxu0
    %v1230 = vxor.u32 %v1227, 2147483648
    %v1231 = vmul.f32 %v1230, 1.442695
    %v1232 = vpow.pop %v1231
    %v1233 = vadd.f32 %v1232, 1.0
    %v1234 = vrcp.pop %v1233
    %v1235 = vmul.f32 1.0, %v1234
    %v1236 = vtanh.pop %v1227
    %v1237 = vmul.f32 %v1235, %v1042
    %1239 = vrot.lane.b32.xlu0 %v1236, 64
    %v1240 = vpop.permute.xlu0 %1239
    %v1242 = vmul.f32 %v1235, %v1240
    %1244 = vrot.lane.b32.xlu0 %v1242, 32
    %v1245 = vpop.permute.xlu0 %1244
    %v1247 = vadd.f32 %v1237, %v1245
    %v1248 = vtanh.pop %v1247
    %1250 = vrot.lane.b32.xlu0 %v1248, 64
    %v1251 = vpop.permute.xlu0 %1250
    %v1253 = vmul.f32 %v1235, %v1251
    %s1254 = scalar_lea.vmem [#allocation2], 40
    %v1255 = vld [vmem:[%s1254] sm:$0xff]
    %v1256 = vsel %vm226, %v1150, 0
    %1258 = vmatprep.subr.mxu0 0.0
    %1259 = vmatpush1.msra.mxu0 0.0
    %1260 = vmatprep.subr.mxu0 0.0
    %1261 = vmatpush1.msra.mxu0 0.0
    %1262 = vmatprep.subr.mxu0 0.0
    %1263 = vmatpush1.msra.mxu0 0.0
    %1264 = vmatprep.subr.mxu0 0.0
    %1265 = vmatpush1.msra.mxu0 0.0
    %1266 = vmatprep.subr.mxu0 0.0
    %1267 = vmatpush1.msra.mxu0 0.0
    %1268 = vmatprep.subr.mxu0 0.0
    %1269 = vmatpush1.msra.mxu0 0.0
    %1270 = vmatprep.subr.mxu0 0.0
    %1271 = vmatpush1.msra.mxu0 0.0
    %1272 = vmatprep.subr.mxu0 0.0
    %1273 = vmatpush1.msra.mxu0 0.0
    %1274 = vmatprep.subr.mxu0 0.0
    %1275 = vmatpush1.msra.mxu0 0.0
    %1276 = vmatprep.subr.mxu0 0.0
    %1277 = vmatpush1.msra.mxu0 0.0
    %1278 = vmatprep.subr.mxu0 0.0
    %1279 = vmatpush1.msra.mxu0 0.0
    %1280 = vmatprep.subr.mxu0 0.0
    %1281 = vmatpush1.msra.mxu0 0.0
    %1282 = vmatprep.subr.mxu0 0.0
    %1283 = vmatpush1.msra.mxu0 %v215
    %1284 = vmatprep.subr.mxu0 0.0
    %1285 = vmatpush1.msra.mxu0 %v214
    %1286 = vmatprep.subr.mxu0 0.0
    %1287 = vmatpush1.msra.mxu0 %v213
    %1288 = vmatprep.subr.mxu0 0.0
    %1289 = vmatpush1.msra.mxu0 %v212
    %1290 = vmatprep.subr.mxu0 0.0
    %1291 = vmatpush2.msra.mxu0 0.0
    %1292 = vmatprep.subr.mxu0 0.0
    %1293 = vmatpush2.msra.mxu0 0.0
    %1294 = vmatprep.subr.mxu0 0.0
    %1295 = vmatpush2.msra.mxu0 0.0
    %1296 = vmatprep.subr.mxu0 0.0
    %1297 = vmatpush2.msra.mxu0 0.0
    %1298 = vmatprep.subr.mxu0 0.0
    %1299 = vmatpush2.msra.mxu0 0.0
    %1300 = vmatprep.subr.mxu0 0.0
    %1301 = vmatpush2.msra.mxu0 0.0
    %1302 = vmatprep.subr.mxu0 0.0
    %1303 = vmatpush2.msra.mxu0 0.0
    %1304 = vmatprep.subr.mxu0 0.0
    %1305 = vmatpush2.msra.mxu0 0.0
    %1306 = vmatprep.subr.mxu0 0.0
    %1307 = vmatpush2.msra.mxu0 0.0
    %1308 = vmatprep.subr.mxu0 0.0
    %1309 = vmatpush2.msra.mxu0 0.0
    %1310 = vmatprep.subr.mxu0 0.0
    %1311 = vmatpush2.msra.mxu0 0.0
    %1312 = vmatprep.subr.mxu0 0.0
    %1313 = vmatpush2.msra.mxu0 0.0
    %1314 = vmatprep.subr.mxu0 0.0
    %1315 = vmatpush2.msra.mxu0 0.0
    %1316 = vmatprep.subr.mxu0 0.0
    %1317 = vmatpush2.msra.mxu0 0.0
    %1318 = vmatprep.subr.mxu0 0.0
    %1319 = vmatpush2.msra.mxu0 0.0
    %1320 = vmatprep.subr.mxu0 0.0
    %1321 = vmatpush2.msra.mxu0 0.0
    %1322 = vmatprep.mubr.f32.mxu0 0.0
    %1323 = vmatmul.mubr.f32.gmra.mxu0 %v1256
    %v1324 = vpop.f32.mrf.mxu0
    %v1325 = vadd.f32 0.0, %v1324
    %v1326 = vpop.f32.mrf.mxu0
    %1327 = vdwg.mxu0
    %v1328 = vadd.f32 %v1255, %v1325
    %v1329 = vxor.u32 %v1328, 2147483648
    %v1330 = vmul.f32 %v1329, 1.442695
    %v1331 = vpow.pop %v1330
    %v1332 = vadd.f32 %v1331, 1.0
    %v1333 = vrcp.pop %v1332
    %v1334 = vmul.f32 1.0, %v1333
    %v1335 = vtanh.pop %v1328
    %v1336 = vmul.f32 %v1334, %v1141
    %1338 = vrot.lane.b32.xlu0 %v1335, 64
    %v1339 = vpop.permute.xlu0 %1338
    %v1341 = vmul.f32 %v1334, %v1339
    %1343 = vrot.lane.b32.xlu0 %v1341, 32
    %v1344 = vpop.permute.xlu0 %1343
    %v1346 = vadd.f32 %v1336, %v1344
    %v1347 = vtanh.pop %v1346
    %1349 = vrot.lane.b32.xlu0 %v1347, 64
    %v1350 = vpop.permute.xlu0 %1349
    %v1352 = vmul.f32 %v1334, %v1350
    %1354 = vrot.lane.b32.xlu0 %v1352, 32
    %v1355 = vpop.permute.xlu0 %1354
    %1358 = vrot.lane.b32.xlu0 %v1253, 64
    %v1359 = vpop.permute.xlu0 %1358
    %v1361 = vsel %vm226, %v1355, %v1359
    %v1363 = vsel %vm336, %v1361, 0
    %1365 = vmatprep.subr.mxu0 0.0
    %1366 = vmatpush1.msra.mxu0 0.0
    %1367 = vmatprep.subr.mxu0 0.0
    %1368 = vmatpush1.msra.mxu0 0.0
    %1369 = vmatprep.subr.mxu0 0.0
    %1370 = vmatpush1.msra.mxu0 0.0
    %1371 = vmatprep.subr.mxu0 0.0
    %1372 = vmatpush1.msra.mxu0 0.0
    %1373 = vmatprep.subr.mxu0 0.0
    %1374 = vmatpush1.msra.mxu0 0.0
    %1375 = vmatprep.subr.mxu0 0.0
    %1376 = vmatpush1.msra.mxu0 0.0
    %1377 = vmatprep.subr.mxu0 0.0
    %1378 = vmatpush1.msra.mxu0 0.0
    %1379 = vmatprep.subr.mxu0 0.0
    %1380 = vmatpush1.msra.mxu0 0.0
    %1381 = vmatprep.subr.mxu0 0.0
    %1382 = vmatpush1.msra.mxu0 %v223
    %1383 = vmatprep.subr.mxu0 0.0
    %1384 = vmatpush1.msra.mxu0 %v222
    %1385 = vmatprep.subr.mxu0 0.0
    %1386 = vmatpush1.msra.mxu0 %v221
    %1387 = vmatprep.subr.mxu0 0.0
    %1388 = vmatpush1.msra.mxu0 %v220
    %1389 = vmatprep.subr.mxu0 0.0
    %1390 = vmatpush1.msra.mxu0 %v219
    %1391 = vmatprep.subr.mxu0 0.0
    %1392 = vmatpush1.msra.mxu0 %v218
    %1393 = vmatprep.subr.mxu0 0.0
    %1394 = vmatpush1.msra.mxu0 %v217
    %1395 = vmatprep.subr.mxu0 0.0
    %1396 = vmatpush1.msra.mxu0 %v216
    %1397 = vmatprep.subr.mxu0 0.0
    %1398 = vmatpush2.msra.mxu0 0.0
    %1399 = vmatprep.subr.mxu0 0.0
    %1400 = vmatpush2.msra.mxu0 0.0
    %1401 = vmatprep.subr.mxu0 0.0
    %1402 = vmatpush2.msra.mxu0 0.0
    %1403 = vmatprep.subr.mxu0 0.0
    %1404 = vmatpush2.msra.mxu0 0.0
    %1405 = vmatprep.subr.mxu0 0.0
    %1406 = vmatpush2.msra.mxu0 0.0
    %1407 = vmatprep.subr.mxu0 0.0
    %1408 = vmatpush2.msra.mxu0 0.0
    %1409 = vmatprep.subr.mxu0 0.0
    %1410 = vmatpush2.msra.mxu0 0.0
    %1411 = vmatprep.subr.mxu0 0.0
    %1412 = vmatpush2.msra.mxu0 0.0
    %1413 = vmatprep.subr.mxu0 0.0
    %1414 = vmatpush2.msra.mxu0 0.0
    %1415 = vmatprep.subr.mxu0 0.0
    %1416 = vmatpush2.msra.mxu0 0.0
    %1417 = vmatprep.subr.mxu0 0.0
    %1418 = vmatpush2.msra.mxu0 0.0
    %1419 = vmatprep.subr.mxu0 0.0
    %1420 = vmatpush2.msra.mxu0 0.0
    %1421 = vmatprep.subr.mxu0 0.0
    %1422 = vmatpush2.msra.mxu0 0.0
    %1423 = vmatprep.subr.mxu0 0.0
    %1424 = vmatpush2.msra.mxu0 0.0
    %1425 = vmatprep.subr.mxu0 0.0
    %1426 = vmatpush2.msra.mxu0 0.0
    %1427 = vmatprep.subr.mxu0 0.0
    %1428 = vmatpush2.msra.mxu0 0.0
    %1429 = vmatprep.mubr.f32.mxu0 0.0
    %1430 = vmatmul.mubr.f32.gmra.mxu0 %v1363
    %v1431 = vpop.f32.mrf.mxu0
    %v1432 = vadd.f32 %v334, %v1431
    %v1433 = vpop.f32.mrf.mxu0
    %1434 = vdwg.mxu0
    %v1435 = vxor.u32 %v1432, 2147483648
    %v1436 = vmul.f32 %v1435, 1.442695
    %v1437 = vpow.pop %v1436
    %v1438 = vadd.f32 %v1437, 1.0
    %v1439 = vrcp.pop %v1438
    %v1440 = vmul.f32 1.0, %v1439
    %v1441 = vtanh.pop %v1432
    %v1442 = vmul.f32 %v1440, %v1247
    %1444 = vrot.lane.b32.xlu0 %v1441, 64
    %v1445 = vpop.permute.xlu0 %1444
    %v1447 = vmul.f32 %v1440, %v1445
    %1449 = vrot.lane.b32.xlu0 %v1447, 32
    %v1450 = vpop.permute.xlu0 %1449
    %v1452 = vadd.f32 %v1442, %v1450
    %v1453 = vtanh.pop %v1452
    %1455 = vrot.lane.b32.xlu0 %v1453, 64
    %v1456 = vpop.permute.xlu0 %1455
    %v1458 = vmul.f32 %v1440, %v1456
    %s1459 = scalar_lea.vmem [#allocation2], 48
    %v1460 = vld [vmem:[%s1459] sm:$0xff]
    %v1461 = vsel %vm226, %v1355, 0
    %1463 = vmatprep.subr.mxu0 0.0
    %1464 = vmatpush1.msra.mxu0 0.0
    %1465 = vmatprep.subr.mxu0 0.0
    %1466 = vmatpush1.msra.mxu0 0.0
    %1467 = vmatprep.subr.mxu0 0.0
    %1468 = vmatpush1.msra.mxu0 0.0
    %1469 = vmatprep.subr.mxu0 0.0
    %1470 = vmatpush1.msra.mxu0 0.0
    %1471 = vmatprep.subr.mxu0 0.0
    %1472 = vmatpush1.msra.mxu0 0.0
    %1473 = vmatprep.subr.mxu0 0.0
    %1474 = vmatpush1.msra.mxu0 0.0
    %1475 = vmatprep.subr.mxu0 0.0
    %1476 = vmatpush1.msra.mxu0 0.0
    %1477 = vmatprep.subr.mxu0 0.0
    %1478 = vmatpush1.msra.mxu0 0.0
    %1479 = vmatprep.subr.mxu0 0.0
    %1480 = vmatpush1.msra.mxu0 0.0
    %1481 = vmatprep.subr.mxu0 0.0
    %1482 = vmatpush1.msra.mxu0 0.0
    %1483 = vmatprep.subr.mxu0 0.0
    %1484 = vmatpush1.msra.mxu0 0.0
    %1485 = vmatprep.subr.mxu0 0.0
    %1486 = vmatpush1.msra.mxu0 0.0
    %1487 = vmatprep.subr.mxu0 0.0
    %1488 = vmatpush1.msra.mxu0 %v215
    %1489 = vmatprep.subr.mxu0 0.0
    %1490 = vmatpush1.msra.mxu0 %v214
    %1491 = vmatprep.subr.mxu0 0.0
    %1492 = vmatpush1.msra.mxu0 %v213
    %1493 = vmatprep.subr.mxu0 0.0
    %1494 = vmatpush1.msra.mxu0 %v212
    %1495 = vmatprep.subr.mxu0 0.0
    %1496 = vmatpush2.msra.mxu0 0.0
    %1497 = vmatprep.subr.mxu0 0.0
    %1498 = vmatpush2.msra.mxu0 0.0
    %1499 = vmatprep.subr.mxu0 0.0
    %1500 = vmatpush2.msra.mxu0 0.0
    %1501 = vmatprep.subr.mxu0 0.0
    %1502 = vmatpush2.msra.mxu0 0.0
    %1503 = vmatprep.subr.mxu0 0.0
    %1504 = vmatpush2.msra.mxu0 0.0
    %1505 = vmatprep.subr.mxu0 0.0
    %1506 = vmatpush2.msra.mxu0 0.0
    %1507 = vmatprep.subr.mxu0 0.0
    %1508 = vmatpush2.msra.mxu0 0.0
    %1509 = vmatprep.subr.mxu0 0.0
    %1510 = vmatpush2.msra.mxu0 0.0
    %1511 = vmatprep.subr.mxu0 0.0
    %1512 = vmatpush2.msra.mxu0 0.0
    %1513 = vmatprep.subr.mxu0 0.0
    %1514 = vmatpush2.msra.mxu0 0.0
    %1515 = vmatprep.subr.mxu0 0.0
    %1516 = vmatpush2.msra.mxu0 0.0
    %1517 = vmatprep.subr.mxu0 0.0
    %1518 = vmatpush2.msra.mxu0 0.0
    %1519 = vmatprep.subr.mxu0 0.0
    %1520 = vmatpush2.msra.mxu0 0.0
    %1521 = vmatprep.subr.mxu0 0.0
    %1522 = vmatpush2.msra.mxu0 0.0
    %1523 = vmatprep.subr.mxu0 0.0
    %1524 = vmatpush2.msra.mxu0 0.0
    %1525 = vmatprep.subr.mxu0 0.0
    %1526 = vmatpush2.msra.mxu0 0.0
    %1527 = vmatprep.mubr.f32.mxu0 0.0
    %1528 = vmatmul.mubr.f32.gmra.mxu0 %v1461
    %v1529 = vpop.f32.mrf.mxu0
    %v1530 = vadd.f32 0.0, %v1529
    %v1531 = vpop.f32.mrf.mxu0
    %1532 = vdwg.mxu0
    %v1533 = vadd.f32 %v1460, %v1530
    %v1534 = vxor.u32 %v1533, 2147483648
    %v1535 = vmul.f32 %v1534, 1.442695
    %v1536 = vpow.pop %v1535
    %v1537 = vadd.f32 %v1536, 1.0
    %v1538 = vrcp.pop %v1537
    %v1539 = vmul.f32 1.0, %v1538
    %v1540 = vtanh.pop %v1533
    %v1541 = vmul.f32 %v1539, %v1346
    %1543 = vrot.lane.b32.xlu0 %v1540, 64
    %v1544 = vpop.permute.xlu0 %1543
    %v1546 = vmul.f32 %v1539, %v1544
    %1548 = vrot.lane.b32.xlu0 %v1546, 32
    %v1549 = vpop.permute.xlu0 %1548
    %v1551 = vadd.f32 %v1541, %v1549
    %v1552 = vtanh.pop %v1551
    %1554 = vrot.lane.b32.xlu0 %v1552, 64
    %v1555 = vpop.permute.xlu0 %1554
    %v1557 = vmul.f32 %v1539, %v1555
    %1559 = vrot.lane.b32.xlu0 %v1557, 32
    %v1560 = vpop.permute.xlu0 %1559
    %1563 = vrot.lane.b32.xlu0 %v1458, 64
    %v1564 = vpop.permute.xlu0 %1563
    %v1566 = vsel %vm226, %v1560, %v1564
    %v1568 = vsel %vm336, %v1566, 0
    %1570 = vmatprep.subr.mxu0 0.0
    %1571 = vmatpush1.msra.mxu0 0.0
    %1572 = vmatprep.subr.mxu0 0.0
    %1573 = vmatpush1.msra.mxu0 0.0
    %1574 = vmatprep.subr.mxu0 0.0
    %1575 = vmatpush1.msra.mxu0 0.0
    %1576 = vmatprep.subr.mxu0 0.0
    %1577 = vmatpush1.msra.mxu0 0.0
    %1578 = vmatprep.subr.mxu0 0.0
    %1579 = vmatpush1.msra.mxu0 0.0
    %1580 = vmatprep.subr.mxu0 0.0
    %1581 = vmatpush1.msra.mxu0 0.0
    %1582 = vmatprep.subr.mxu0 0.0
    %1583 = vmatpush1.msra.mxu0 0.0
    %1584 = vmatprep.subr.mxu0 0.0
    %1585 = vmatpush1.msra.mxu0 0.0
    %1586 = vmatprep.subr.mxu0 0.0
    %1587 = vmatpush1.msra.mxu0 %v223
    %1588 = vmatprep.subr.mxu0 0.0
    %1589 = vmatpush1.msra.mxu0 %v222
    %1590 = vmatprep.subr.mxu0 0.0
    %1591 = vmatpush1.msra.mxu0 %v221
    %1592 = vmatprep.subr.mxu0 0.0
    %1593 = vmatpush1.msra.mxu0 %v220
    %1594 = vmatprep.subr.mxu0 0.0
    %1595 = vmatpush1.msra.mxu0 %v219
    %1596 = vmatprep.subr.mxu0 0.0
    %1597 = vmatpush1.msra.mxu0 %v218
    %1598 = vmatprep.subr.mxu0 0.0
    %1599 = vmatpush1.msra.mxu0 %v217
    %1600 = vmatprep.subr.mxu0 0.0
    %1601 = vmatpush1.msra.mxu0 %v216
    %1602 = vmatprep.subr.mxu0 0.0
    %1603 = vmatpush2.msra.mxu0 0.0
    %1604 = vmatprep.subr.mxu0 0.0
    %1605 = vmatpush2.msra.mxu0 0.0
    %1606 = vmatprep.subr.mxu0 0.0
    %1607 = vmatpush2.msra.mxu0 0.0
    %1608 = vmatprep.subr.mxu0 0.0
    %1609 = vmatpush2.msra.mxu0 0.0
    %1610 = vmatprep.subr.mxu0 0.0
    %1611 = vmatpush2.msra.mxu0 0.0
    %1612 = vmatprep.subr.mxu0 0.0
    %1613 = vmatpush2.msra.mxu0 0.0
    %1614 = vmatprep.subr.mxu0 0.0
    %1615 = vmatpush2.msra.mxu0 0.0
    %1616 = vmatprep.subr.mxu0 0.0
    %1617 = vmatpush2.msra.mxu0 0.0
    %1618 = vmatprep.subr.mxu0 0.0
    %1619 = vmatpush2.msra.mxu0 0.0
    %1620 = vmatprep.subr.mxu0 0.0
    %1621 = vmatpush2.msra.mxu0 0.0
    %1622 = vmatprep.subr.mxu0 0.0
    %1623 = vmatpush2.msra.mxu0 0.0
    %1624 = vmatprep.subr.mxu0 0.0
    %1625 = vmatpush2.msra.mxu0 0.0
    %1626 = vmatprep.subr.mxu0 0.0
    %1627 = vmatpush2.msra.mxu0 0.0
    %1628 = vmatprep.subr.mxu0 0.0
    %1629 = vmatpush2.msra.mxu0 0.0
    %1630 = vmatprep.subr.mxu0 0.0
    %1631 = vmatpush2.msra.mxu0 0.0
    %1632 = vmatprep.subr.mxu0 0.0
    %1633 = vmatpush2.msra.mxu0 0.0
    %1634 = vmatprep.mubr.f32.mxu0 0.0
    %1635 = vmatmul.mubr.f32.gmra.mxu0 %v1568
    %v1636 = vpop.f32.mrf.mxu0
    %v1637 = vadd.f32 %v334, %v1636
    %v1638 = vpop.f32.mrf.mxu0
    %1639 = vdwg.mxu0
    %v1640 = vxor.u32 %v1637, 2147483648
    %v1641 = vmul.f32 %v1640, 1.442695
    %v1642 = vpow.pop %v1641
    %v1643 = vadd.f32 %v1642, 1.0
    %v1644 = vrcp.pop %v1643
    %v1645 = vmul.f32 1.0, %v1644
    %v1646 = vtanh.pop %v1637
    %v1647 = vmul.f32 %v1645, %v1452
    %1649 = vrot.lane.b32.xlu0 %v1646, 64
    %v1650 = vpop.permute.xlu0 %1649
    %v1652 = vmul.f32 %v1645, %v1650
    %1654 = vrot.lane.b32.xlu0 %v1652, 32
    %v1655 = vpop.permute.xlu0 %1654
    %v1657 = vadd.f32 %v1647, %v1655
    %v1658 = vtanh.pop %v1657
    %1660 = vrot.lane.b32.xlu0 %v1658, 64
    %v1661 = vpop.permute.xlu0 %1660
    %v1663 = vmul.f32 %v1645, %v1661
    %s1664 = scalar_lea.vmem [#allocation2], 56
    %v1665 = vld [vmem:[%s1664] sm:$0xff]
    %v1666 = vsel %vm226, %v1560, 0
    %1668 = vmatprep.subr.mxu0 0.0
    %1669 = vmatpush1.msra.mxu0 0.0
    %1670 = vmatprep.subr.mxu0 0.0
    %1671 = vmatpush1.msra.mxu0 0.0
    %1672 = vmatprep.subr.mxu0 0.0
    %1673 = vmatpush1.msra.mxu0 0.0
    %1674 = vmatprep.subr.mxu0 0.0
    %1675 = vmatpush1.msra.mxu0 0.0
    %1676 = vmatprep.subr.mxu0 0.0
    %1677 = vmatpush1.msra.mxu0 0.0
    %1678 = vmatprep.subr.mxu0 0.0
    %1679 = vmatpush1.msra.mxu0 0.0
    %1680 = vmatprep.subr.mxu0 0.0
    %1681 = vmatpush1.msra.mxu0 0.0
    %1682 = vmatprep.subr.mxu0 0.0
    %1683 = vmatpush1.msra.mxu0 0.0
    %1684 = vmatprep.subr.mxu0 0.0
    %1685 = vmatpush1.msra.mxu0 0.0
    %1686 = vmatprep.subr.mxu0 0.0
    %1687 = vmatpush1.msra.mxu0 0.0
    %1688 = vmatprep.subr.mxu0 0.0
    %1689 = vmatpush1.msra.mxu0 0.0
    %1690 = vmatprep.subr.mxu0 0.0
    %1691 = vmatpush1.msra.mxu0 0.0
    %1692 = vmatprep.subr.mxu0 0.0
    %1693 = vmatpush1.msra.mxu0 %v215
    %1694 = vmatprep.subr.mxu0 0.0
    %1695 = vmatpush1.msra.mxu0 %v214
    %1696 = vmatprep.subr.mxu0 0.0
    %1697 = vmatpush1.msra.mxu0 %v213
    %1698 = vmatprep.subr.mxu0 0.0
    %1699 = vmatpush1.msra.mxu0 %v212
    %1700 = vmatprep.subr.mxu0 0.0
    %1701 = vmatpush2.msra.mxu0 0.0
    %1702 = vmatprep.subr.mxu0 0.0
    %1703 = vmatpush2.msra.mxu0 0.0
    %1704 = vmatprep.subr.mxu0 0.0
    %1705 = vmatpush2.msra.mxu0 0.0
    %1706 = vmatprep.subr.mxu0 0.0
    %1707 = vmatpush2.msra.mxu0 0.0
    %1708 = vmatprep.subr.mxu0 0.0
    %1709 = vmatpush2.msra.mxu0 0.0
    %1710 = vmatprep.subr.mxu0 0.0
    %1711 = vmatpush2.msra.mxu0 0.0
    %1712 = vmatprep.subr.mxu0 0.0
    %1713 = vmatpush2.msra.mxu0 0.0
    %1714 = vmatprep.subr.mxu0 0.0
    %1715 = vmatpush2.msra.mxu0 0.0
    %1716 = vmatprep.subr.mxu0 0.0
    %1717 = vmatpush2.msra.mxu0 0.0
    %1718 = vmatprep.subr.mxu0 0.0
    %1719 = vmatpush2.msra.mxu0 0.0
    %1720 = vmatprep.subr.mxu0 0.0
    %1721 = vmatpush2.msra.mxu0 0.0
    %1722 = vmatprep.subr.mxu0 0.0
    %1723 = vmatpush2.msra.mxu0 0.0
    %1724 = vmatprep.subr.mxu0 0.0
    %1725 = vmatpush2.msra.mxu0 0.0
    %1726 = vmatprep.subr.mxu0 0.0
    %1727 = vmatpush2.msra.mxu0 0.0
    %1728 = vmatprep.subr.mxu0 0.0
    %1729 = vmatpush2.msra.mxu0 0.0
    %1730 = vmatprep.subr.mxu0 0.0
    %1731 = vmatpush2.msra.mxu0 0.0
    %1732 = vmatprep.mubr.f32.mxu0 0.0
    %1733 = vmatmul.mubr.f32.gmra.mxu0 %v1666
    %v1734 = vpop.f32.mrf.mxu0
    %v1735 = vadd.f32 0.0, %v1734
    %v1736 = vpop.f32.mrf.mxu0
    %1737 = vdwg.mxu0
    %v1738 = vadd.f32 %v1665, %v1735
    %v1739 = vxor.u32 %v1738, 2147483648
    %v1740 = vmul.f32 %v1739, 1.442695
    %v1741 = vpow.pop %v1740
    %v1742 = vadd.f32 %v1741, 1.0
    %v1743 = vrcp.pop %v1742
    %v1744 = vmul.f32 1.0, %v1743
    %v1745 = vtanh.pop %v1738
    %v1746 = vmul.f32 %v1744, %v1551
    %1748 = vrot.lane.b32.xlu0 %v1745, 64
    %v1749 = vpop.permute.xlu0 %1748
    %v1751 = vmul.f32 %v1744, %v1749
    %1753 = vrot.lane.b32.xlu0 %v1751, 32
    %v1754 = vpop.permute.xlu0 %1753
    %v1756 = vadd.f32 %v1746, %v1754
    %v1757 = vtanh.pop %v1756
    %1759 = vrot.lane.b32.xlu0 %v1757, 64
    %v1760 = vpop.permute.xlu0 %1759
    %v1762 = vmul.f32 %v1744, %v1760
    %1764 = vrot.lane.b32.xlu0 %v1762, 32
    %v1765 = vpop.permute.xlu0 %1764
    %1768 = vrot.lane.b32.xlu0 %v1663, 64
    %v1769 = vpop.permute.xlu0 %1768
    %v1771 = vsel %vm226, %v1765, %v1769
    %v1773 = vsel %vm336, %v1771, 0
    %1775 = vmatprep.subr.mxu0 0.0
    %1776 = vmatpush1.msra.mxu0 0.0
    %1777 = vmatprep.subr.mxu0 0.0
    %1778 = vmatpush1.msra.mxu0 0.0
    %1779 = vmatprep.subr.mxu0 0.0
    %1780 = vmatpush1.msra.mxu0 0.0
    %1781 = vmatprep.subr.mxu0 0.0
    %1782 = vmatpush1.msra.mxu0 0.0
    %1783 = vmatprep.subr.mxu0 0.0
    %1784 = vmatpush1.msra.mxu0 0.0
    %1785 = vmatprep.subr.mxu0 0.0
    %1786 = vmatpush1.msra.mxu0 0.0
    %1787 = vmatprep.subr.mxu0 0.0
    %1788 = vmatpush1.msra.mxu0 0.0
    %1789 = vmatprep.subr.mxu0 0.0
    %1790 = vmatpush1.msra.mxu0 0.0
    %1791 = vmatprep.subr.mxu0 0.0
    %1792 = vmatpush1.msra.mxu0 %v223
    %1793 = vmatprep.subr.mxu0 0.0
    %1794 = vmatpush1.msra.mxu0 %v222
    %1795 = vmatprep.subr.mxu0 0.0
    %1796 = vmatpush1.msra.mxu0 %v221
    %1797 = vmatprep.subr.mxu0 0.0
    %1798 = vmatpush1.msra.mxu0 %v220
    %1799 = vmatprep.subr.mxu0 0.0
    %1800 = vmatpush1.msra.mxu0 %v219
    %1801 = vmatprep.subr.mxu0 0.0
    %1802 = vmatpush1.msra.mxu0 %v218
    %1803 = vmatprep.subr.mxu0 0.0
    %1804 = vmatpush1.msra.mxu0 %v217
    %1805 = vmatprep.subr.mxu0 0.0
    %1806 = vmatpush1.msra.mxu0 %v216
    %1807 = vmatprep.subr.mxu0 0.0
    %1808 = vmatpush2.msra.mxu0 0.0
    %1809 = vmatprep.subr.mxu0 0.0
    %1810 = vmatpush2.msra.mxu0 0.0
    %1811 = vmatprep.subr.mxu0 0.0
    %1812 = vmatpush2.msra.mxu0 0.0
    %1813 = vmatprep.subr.mxu0 0.0
    %1814 = vmatpush2.msra.mxu0 0.0
    %1815 = vmatprep.subr.mxu0 0.0
    %1816 = vmatpush2.msra.mxu0 0.0
    %1817 = vmatprep.subr.mxu0 0.0
    %1818 = vmatpush2.msra.mxu0 0.0
    %1819 = vmatprep.subr.mxu0 0.0
    %1820 = vmatpush2.msra.mxu0 0.0
    %1821 = vmatprep.subr.mxu0 0.0
    %1822 = vmatpush2.msra.mxu0 0.0
    %1823 = vmatprep.subr.mxu0 0.0
    %1824 = vmatpush2.msra.mxu0 0.0
    %1825 = vmatprep.subr.mxu0 0.0
    %1826 = vmatpush2.msra.mxu0 0.0
    %1827 = vmatprep.subr.mxu0 0.0
    %1828 = vmatpush2.msra.mxu0 0.0
    %1829 = vmatprep.subr.mxu0 0.0
    %1830 = vmatpush2.msra.mxu0 0.0
    %1831 = vmatprep.subr.mxu0 0.0
    %1832 = vmatpush2.msra.mxu0 0.0
    %1833 = vmatprep.subr.mxu0 0.0
    %1834 = vmatpush2.msra.mxu0 0.0
    %1835 = vmatprep.subr.mxu0 0.0
    %1836 = vmatpush2.msra.mxu0 0.0
    %1837 = vmatprep.subr.mxu0 0.0
    %1838 = vmatpush2.msra.mxu0 0.0
    %1839 = vmatprep.mubr.f32.mxu0 0.0
    %1840 = vmatmul.mubr.f32.gmra.mxu0 %v1773
    %v1841 = vpop.f32.mrf.mxu0
    %v1842 = vadd.f32 %v334, %v1841
    %v1843 = vpop.f32.mrf.mxu0
    %1844 = vdwg.mxu0
    %v1845 = vxor.u32 %v1842, 2147483648
    %v1846 = vmul.f32 %v1845, 1.442695
    %v1847 = vpow.pop %v1846
    %v1848 = vadd.f32 %v1847, 1.0
    %v1849 = vrcp.pop %v1848
    %v1850 = vmul.f32 1.0, %v1849
    %v1851 = vtanh.pop %v1842
    %v1852 = vmul.f32 %v1850, %v1657
    %1854 = vrot.lane.b32.xlu0 %v1851, 64
    %v1855 = vpop.permute.xlu0 %1854
    %v1857 = vmul.f32 %v1850, %v1855
    %1859 = vrot.lane.b32.xlu0 %v1857, 32
    %v1860 = vpop.permute.xlu0 %1859
    %v1862 = vadd.f32 %v1852, %v1860
    %v1863 = vtanh.pop %v1862
    %1865 = vrot.lane.b32.xlu0 %v1863, 64
    %v1866 = vpop.permute.xlu0 %1865
    %v1868 = vmul.f32 %v1850, %v1866
    %v1869 = vld [vmem:[#allocation6] sm:$0xff]
    %v1870 = vld [vmem:[#allocation6 + $0x8] sm:$0xff]
    %v1871 = vld [vmem:[#allocation6 + $0x10] sm:$0xff]
    %v1872 = vld [vmem:[#allocation6 + $0x18] sm:$0xff]
    %v1873 = vld [vmem:[%s7] sm:$0x1]
    %v1875 = vlaneseq
    %v1876 = vshrl.u32 %v1875, 7
    %v1877 = vsub.s32 0, %v1876
    %v1878 = vrot.slane %v1873, %v1877
    %1881 = vrot.lane.b32.xlu0 %v1868, 32
    %v1882 = vpop.permute.xlu0 %1881
    %v1883 = vsel %vm226, %v1882, 0
    %1885 = vmatprep.subr.mxu0 0.0
    %1886 = vmatpush1.msra.mxu0 0.0
    %1887 = vmatprep.subr.mxu0 0.0
    %1888 = vmatpush1.msra.mxu0 0.0
    %1889 = vmatprep.subr.mxu0 0.0
    %1890 = vmatpush1.msra.mxu0 0.0
    %1891 = vmatprep.subr.mxu0 0.0
    %1892 = vmatpush1.msra.mxu0 0.0
    %1893 = vmatprep.subr.mxu0 0.0
    %1894 = vmatpush1.msra.mxu0 0.0
    %1895 = vmatprep.subr.mxu0 0.0
    %1896 = vmatpush1.msra.mxu0 0.0
    %1897 = vmatprep.subr.mxu0 0.0
    %1898 = vmatpush1.msra.mxu0 0.0
    %1899 = vmatprep.subr.mxu0 0.0
    %1900 = vmatpush1.msra.mxu0 0.0
    %1901 = vmatprep.subr.mxu0 0.0
    %1902 = vmatpush1.msra.mxu0 0.0
    %1903 = vmatprep.subr.mxu0 0.0
    %1904 = vmatpush1.msra.mxu0 0.0
    %1905 = vmatprep.subr.mxu0 0.0
    %1906 = vmatpush1.msra.mxu0 0.0
    %1907 = vmatprep.subr.mxu0 0.0
    %1908 = vmatpush1.msra.mxu0 0.0
    %1909 = vmatprep.subr.mxu0 0.0
    %1910 = vmatpush1.msra.mxu0 %v1872
    %1911 = vmatprep.subr.mxu0 0.0
    %1912 = vmatpush1.msra.mxu0 %v1871
    %1913 = vmatprep.subr.mxu0 0.0
    %1914 = vmatpush1.msra.mxu0 %v1870
    %1915 = vmatprep.subr.mxu0 0.0
    %1916 = vmatpush1.msra.mxu0 %v1869
    %1917 = vmatprep.subr.mxu0 0.0
    %1918 = vmatpush2.msra.mxu0 0.0
    %1919 = vmatprep.subr.mxu0 0.0
    %1920 = vmatpush2.msra.mxu0 0.0
    %1921 = vmatprep.subr.mxu0 0.0
    %1922 = vmatpush2.msra.mxu0 0.0
    %1923 = vmatprep.subr.mxu0 0.0
    %1924 = vmatpush2.msra.mxu0 0.0
    %1925 = vmatprep.subr.mxu0 0.0
    %1926 = vmatpush2.msra.mxu0 0.0
    %1927 = vmatprep.subr.mxu0 0.0
    %1928 = vmatpush2.msra.mxu0 0.0
    %1929 = vmatprep.subr.mxu0 0.0
    %1930 = vmatpush2.msra.mxu0 0.0
    %1931 = vmatprep.subr.mxu0 0.0
    %1932 = vmatpush2.msra.mxu0 0.0
    %1933 = vmatprep.subr.mxu0 0.0
    %1934 = vmatpush2.msra.mxu0 0.0
    %1935 = vmatprep.subr.mxu0 0.0
    %1936 = vmatpush2.msra.mxu0 0.0
    %1937 = vmatprep.subr.mxu0 0.0
    %1938 = vmatpush2.msra.mxu0 0.0
    %1939 = vmatprep.subr.mxu0 0.0
    %1940 = vmatpush2.msra.mxu0 0.0
    %1941 = vmatprep.subr.mxu0 0.0
    %1942 = vmatpush2.msra.mxu0 0.0
    %1943 = vmatprep.subr.mxu0 0.0
    %1944 = vmatpush2.msra.mxu0 0.0
    %1945 = vmatprep.subr.mxu0 0.0
    %1946 = vmatpush2.msra.mxu0 0.0
    %1947 = vmatprep.subr.mxu0 0.0
    %1948 = vmatpush2.msra.mxu0 0.0
    %1949 = vmatprep.mubr.f32.mxu0 0.0
    %1950 = vmatmul.mubr.f32.gmra.mxu0 %v1883
    %v1951 = vpop.f32.mrf.mxu0
    %v1952 = vadd.f32 %v1878, %v1951
    %v1953 = vpop.f32.mrf.mxu0
    %1954 = vdwg.mxu0
    %1955 = vst [vmem:[#allocation8] sm:$0xff] %v1952
    // Predicated region
    $region42: #{tpu_custom_call.1} parent=1 // pred_check
      _
    $region43: #{tpu_custom_call.1} parent=1 // pred_check_branch
      %1957 = sbr.rel (0) target = $region45
    $region44: #{tpu_custom_call.1} parent=1 // pred_region
      %s1959 = ssub.s32 128, 128
      %1960 = vsyncadd [#allocation5], %s1959
      %s1962 = sshll.u32 [#allocation8], 4
      %s1963 = int_to_ptr.vmem [resolvable:$true] %s1962
      %1965 = dma.vmem_to_hbm [thread:$0]  %s1963, 128, %s8, [#allocation5]
    $region45: #{tpu_custom_call.1} parent=1 // pred_fallthru
      _
    // Predicated region
    $region46: #{tpu_custom_call.1} parent=1 // pred_check
      _
    $region47: #{tpu_custom_call.1} parent=1 // pred_check_branch
      %1967 = sbr.rel (0) target = $region49
    $region48: #{tpu_custom_call.1} parent=1 // pred_region
      %1968 = dma.done [#allocation5], 128
    $region49: #{tpu_custom_call.1} parent=1 // pred_fallthru
      _
    %1969 = vsyncpa [#allocation4], 1
    %1970 = vsyncpa [#allocation7], 1
    %1971 = vsyncpa [#allocation5], 1

</llo_original>
